<compile_context>
chip_gen: v7x
topology: tpu7x:2x2x1
jax: 0.10.0
libtpu: 0.0.40
codegen_flags: <defaults>
</compile_context>

<pallas_src>
import jax
import jax.numpy as jnp
import numpy as np
from jax.experimental import pallas as pl
from jax.experimental.pallas import tpu as pltpu


def _decoder_kernel(
    emb_ref,     # (Bt, E)       embedded tokens for this batch tile
    hid_ref,     # (Bt, H)       previous hidden state (hidden[-1])
    enc_ref,     # (Bt*S, H)     encoder outputs, batch-major flattened over S
    w1t_ref,     # (H, H)        attention W1, pre-transposed
    b1_ref,      # (1, H)
    w2t_ref,     # (H, H)        attention W2, pre-transposed
    b2_ref,      # (1, H)
    vw_ref,      # (1, H)        attention V weight (row vector)
    vb_ref,      # (1, 1)
    wihe_ref,    # (3, E, H)     GRU input weights (embedding part), gate-major, transposed
    wihc_ref,    # (3, H, H)     GRU input weights (context part), gate-major, transposed
    bih_ref,     # (3, 1, H)
    whh_ref,     # (3, H, H)     GRU hidden weights, gate-major, transposed
    bhh_ref,     # (3, 1, H)
    fcwt_ref,    # (H, V)        fc weight, pre-transposed
    fcb_ref,     # (1, V)
    logits_ref,  # (Bt, V)  out
    hnew_ref,    # (Bt, H)  out
    attn_ref,    # (Bt, S)  out  (lane-dense; wrapper reshapes to (B, S, 1))
):
    bt, H = hid_ref.shape
    S = enc_ref.shape[0] // bt

    enc_flat = enc_ref[...]            # (Bt*S, H)
    h = hid_ref[...]                   # (Bt, H)
    emb = emb_ref[...]                 # (Bt, E)

    # --- Bahdanau attention (whole batch tile at once) ------------------------
    s1 = jnp.dot(enc_flat, w1t_ref[...],
                 preferred_element_type=jnp.float32) + b1_ref[...]       # (Bt*S, H)
    s2 = jnp.dot(h, w2t_ref[...],
                 preferred_element_type=jnp.float32) + b2_ref[...]       # (Bt, H)
    t = jnp.tanh(s1.reshape(bt, S, H) + s2[:, None, :])                  # (Bt, S, H)

    # score with S on the lane axis -> lane-axis softmax, lane-dense output
    score = jnp.sum(t * vw_ref[...][None, :, :], axis=-1) + vb_ref[...]  # (Bt, S)
    score = score - jnp.max(score, axis=-1, keepdims=True)
    e = jnp.exp(score)
    attn = e / jnp.sum(e, axis=-1, keepdims=True)                        # (Bt, S)

    # context = attn @ enc as a batched MXU matmul
    enc3 = enc_flat.reshape(bt, S, H)                                    # (Bt, S, H)
    ctx3 = jnp.einsum("bqs,bsh->bqh", attn[:, None, :], enc3,
                      preferred_element_type=jnp.float32)                # (Bt, 1, H)
    context = ctx3.reshape(bt, H)                                        # (Bt, H)

    # --- single-timestep GRU cell (PyTorch gate order: r, z, n) ---------------
    # Gate-major weight layout: gates are selected along the leading axis
    # (free), never by slicing the lane dimension.
    def gi(g):
        return (jnp.dot(emb, wihe_ref[g], preferred_element_type=jnp.float32)
                + jnp.dot(context, wihc_ref[g], preferred_element_type=jnp.float32)
                + bih_ref[g])

    def gh(g):
        return jnp.dot(h, whh_ref[g], preferred_element_type=jnp.float32) + bhh_ref[g]

    r = jax.nn.sigmoid(gi(0) + gh(0))
    z = jax.nn.sigmoid(gi(1) + gh(1))
    n = jnp.tanh(gi(2) + r * gh(2))
    h_new = (1.0 - z) * n + z * h                                        # (Bt, H)

    # --- output projection -----------------------------------------------------
    logits = jnp.dot(h_new, fcwt_ref[...],
                     preferred_element_type=jnp.float32) + fcb_ref[...]  # (Bt, V)

    logits_ref[...] = logits.astype(logits_ref.dtype)
    hnew_ref[...] = h_new.astype(hnew_ref.dtype)
    attn_ref[...] = attn.astype(attn_ref.dtype)


def decoder_forward(x, hidden, encoder_outputs, params):
    """Pallas implementation of Decoder.forward.

    x:               (B,)      int32 token ids
    hidden:          (1, B, H) float32
    encoder_outputs: (B, S, H) float32
    returns: (logits (B, V), hidden (1, B, H), attention_weights (B, S, 1))
    """
    B, S, H = encoder_outputs.shape
    E = params["embedding"].shape[1]
    V = params["fc_w"].shape[0]

    # Batch tile: at small B process the whole batch in one grid step. For large B
    # use tiles of 128 rows (and on v7x keep >=2 tiles so both TensorCores are used).
    bt = B if B <= 128 else 128
    assert B % bt == 0, "pad the batch to a multiple of the batch tile"
    n_tiles = B // bt

    # glue: embedding lookup (padding_idx=0 row is zero in the table)
    embedded = params["embedding"][x]                     # (B, E)
    h_prev = hidden[-1]                                   # (B, H)
    enc_flat = encoder_outputs.reshape(B * S, H)          # (B*S, H)

    # pre-transpose weights so the kernel does (act @ W^T) as (act @ Wt)
    w1t = params["att_w1"].T                              # (H, H)
    w2t = params["att_w2"].T                              # (H, H)
    vw = params["att_v_w"].reshape(1, H)                  # (1, H)
    vb = params["att_v_b"].reshape(1, 1)                  # (1, 1)
    b1 = params["att_b1"].reshape(1, H)
    b2 = params["att_b2"].reshape(1, H)

    wih = params["gru_w_ih"]                              # (3H, E+H)
    whh = params["gru_w_hh"]                              # (3H, H)
    wihe_g = jnp.transpose(wih[:, :E].reshape(3, H, E), (0, 2, 1))   # (3, E, H)
    wihc_g = jnp.transpose(wih[:, E:].reshape(3, H, H), (0, 2, 1))   # (3, H, H)
    whh_g = jnp.transpose(whh.reshape(3, H, H), (0, 2, 1))           # (3, H, H)
    bih_g = params["gru_b_ih"].reshape(3, 1, H)
    bhh_g = params["gru_b_hh"].reshape(3, 1, H)

    fcwt = params["fc_w"].T                               # (H, V)
    fcb = params["fc_b"].reshape(1, V)

    shared2 = lambda b: (0, 0)
    shared3 = lambda b: (0, 0, 0)

    # advisory cost estimate so XLA schedules the surrounding gather/reshape sensibly
    flops = 2 * B * (S * H * H            # W1 over encoder outputs
                     + H * H              # W2 over hidden
                     + 2 * S * H          # score reduce + context matmul
                     + 3 * H * (E + H)    # GRU input matmuls (embedding + context)
                     + 3 * H * H          # GRU hidden matmul
                     + H * V)             # fc projection
    transcendentals = B * (S * H + S + 3 * H)
    param_bytes = 4 * (2 * H * H + 3 * H + 1 + 3 * H * (E + 2 * H) + 6 * H + H * V + V)
    act_bytes = 4 * B * (E + 2 * H + S * H + V + S)
    cost = pl.CostEstimate(flops=flops, transcendentals=transcendentals,
                           bytes_accessed=param_bytes + act_bytes)

    logits, h_new, attn = pl.pallas_call(
        _decoder_kernel,
        out_shape=(
            jax.ShapeDtypeStruct((B, V), jnp.float32),
            jax.ShapeDtypeStruct((B, H), jnp.float32),
            jax.ShapeDtypeStruct((B, S), jnp.float32),   # lane-dense attention
        ),
        grid_spec=pltpu.PrefetchScalarGridSpec(
            num_scalar_prefetch=0,
            grid=(n_tiles,),
            in_specs=[
                pl.BlockSpec((bt, E), lambda b: (b, 0)),        # embedded
                pl.BlockSpec((bt, H), lambda b: (b, 0)),        # hidden[-1]
                pl.BlockSpec((bt * S, H), lambda b: (b, 0)),    # encoder outputs (flat)
                pl.BlockSpec((H, H), shared2),                  # W1^T
                pl.BlockSpec((1, H), shared2),                  # b1
                pl.BlockSpec((H, H), shared2),                  # W2^T
                pl.BlockSpec((1, H), shared2),                  # b2
                pl.BlockSpec((1, H), shared2),                  # V weight (row)
                pl.BlockSpec((1, 1), shared2),                  # V bias
                pl.BlockSpec((3, E, H), shared3),               # W_ih (emb) gate-major
                pl.BlockSpec((3, H, H), shared3),               # W_ih (ctx) gate-major
                pl.BlockSpec((3, 1, H), shared3),               # b_ih gate-major
                pl.BlockSpec((3, H, H), shared3),               # W_hh gate-major
                pl.BlockSpec((3, 1, H), shared3),               # b_hh gate-major
                # For production vocab sizes, tile V with an extra grid axis
                # (or split the fc into its own GEMM) instead of full residency.
                pl.BlockSpec((H, V), shared2),                  # fc W^T
                pl.BlockSpec((1, V), shared2),                  # fc b
            ],
            out_specs=[
                pl.BlockSpec((bt, V), lambda b: (b, 0)),
                pl.BlockSpec((bt, H), lambda b: (b, 0)),
                pl.BlockSpec((bt, S), lambda b: (b, 0)),
            ],
        ),
        compiler_params=pltpu.CompilerParams(
            dimension_semantics=("parallel",)),
        cost_estimate=cost,
        input_output_aliases={1: 1},   # h_prev -> h_new: recurrent state in place
    )(embedded, h_prev, enc_flat,
      w1t, b1, w2t, b2, vw, vb,
      wihe_g, wihc_g, bih_g, whh_g, bhh_g, fcwt, fcb)

    return logits, h_new[None], attn[..., None]


# ----------------------------------------------------------------------------
# pure-JAX reference (mirrors the PyTorch forward) for a correctness check
# ----------------------------------------------------------------------------
def decoder_reference(x, hidden, encoder_outputs, params):
    H = encoder_outputs.shape[-1]
    emb = params["embedding"][x]                           # (B, E)
    h = hidden[-1]                                         # (B, H)

    s1 = encoder_outputs @ params["att_w1"].T + params["att_b1"]
    s2 = (h @ params["att_w2"].T + params["att_b2"])[:, None, :]
    score = jnp.tanh(s1 + s2) @ params["att_v_w"].T + params["att_v_b"]   # (B, S, 1)
    attn = jax.nn.softmax(score, axis=1)
    context = jnp.sum(attn * encoder_outputs, axis=1)      # (B, H)

    x_cat = jnp.concatenate([emb, context], axis=-1)
    gi = x_cat @ params["gru_w_ih"].T + params["gru_b_ih"]
    gh = h @ params["gru_w_hh"].T + params["gru_b_hh"]
    r = jax.nn.sigmoid(gi[:, :H] + gh[:, :H])
    z = jax.nn.sigmoid(gi[:, H:2 * H] + gh[:, H:2 * H])
    n = jnp.tanh(gi[:, 2 * H:] + r * gh[:, 2 * H:])
    h_new = (1.0 - z) * n + z * h

    logits = h_new @ params["fc_w"].T + params["fc_b"]
    return logits, h_new[None], attn


def make_params(key, vocab, embed, hidden):
    ks = jax.random.split(key, 12)
    scale = 0.1
    emb_table = scale * jax.random.normal(ks[0], (vocab, embed), jnp.float32)
    emb_table = emb_table.at[0].set(0.0)                   # padding_idx=0
    return {
        "embedding": emb_table,
        "att_w1": scale * jax.random.normal(ks[1], (hidden, hidden), jnp.float32),
        "att_b1": scale * jax.random.normal(ks[2], (hidden,), jnp.float32),
        "att_w2": scale * jax.random.normal(ks[3], (hidden, hidden), jnp.float32),
        "att_b2": scale * jax.random.normal(ks[4], (hidden,), jnp.float32),
        "att_v_w": scale * jax.random.normal(ks[5], (1, hidden), jnp.float32),
        "att_v_b": scale * jax.random.normal(ks[6], (1,), jnp.float32),
        "gru_w_ih": scale * jax.random.normal(ks[7], (3 * hidden, embed + hidden), jnp.float32),
        "gru_w_hh": scale * jax.random.normal(ks[8], (3 * hidden, hidden), jnp.float32),
        "gru_b_ih": scale * jax.random.normal(ks[9], (3 * hidden,), jnp.float32),
        "gru_b_hh": scale * jax.random.normal(ks[10], (3 * hidden,), jnp.float32),
        "fc_w": scale * jax.random.normal(ks[11], (vocab, hidden), jnp.float32),
        "fc_b": jnp.zeros((vocab,), jnp.float32),
    }


if __name__ == "__main__":
    # small shapes consistent with the module's forward
    B, S, H, E, VOCAB = 2, 8, 32, 32, 64

    key = jax.random.PRNGKey(0)
    kp, kx, kh, ke = jax.random.split(key, 4)

    params = make_params(kp, VOCAB, E, H)
    x = jax.random.randint(kx, (B,), 1, VOCAB, dtype=jnp.int32)   # token ids
    hidden = 0.1 * jax.random.normal(kh, (1, B, H), jnp.float32)
    encoder_outputs = 0.1 * jax.random.normal(ke, (B, S, H), jnp.float32)

    fwd = jax.jit(decoder_forward)
    logits, h_new, attn = fwd(x, hidden, encoder_outputs, params)
    jax.block_until_ready((logits, h_new, attn))

    ref_logits, ref_h, ref_attn = decoder_reference(x, hidden, encoder_outputs, params)
    np.testing.assert_allclose(np.asarray(logits), np.asarray(ref_logits), atol=1e-5, rtol=1e-5)
    np.testing.assert_allclose(np.asarray(h_new), np.asarray(ref_h), atol=1e-5, rtol=1e-5)
    np.testing.assert_allclose(np.asarray(attn), np.asarray(ref_attn), atol=1e-5, rtol=1e-5)

    print("KERNEL_OK")
</pallas_src>

<mosaic_0001>
module attributes {stable_mosaic.version = 11 : i64} {
  func.func @_decoder_kernel(%arg0: i32, %arg1: memref<2x32xf32, #tpu.memory_space<vmem>>, %arg2: memref<2x32xf32, #tpu.memory_space<vmem>>, %arg3: memref<16x32xf32, #tpu.memory_space<vmem>>, %arg4: memref<32x32xf32, #tpu.memory_space<vmem>>, %arg5: memref<1x32xf32, #tpu.memory_space<vmem>>, %arg6: memref<32x32xf32, #tpu.memory_space<vmem>>, %arg7: memref<1x32xf32, #tpu.memory_space<vmem>>, %arg8: memref<1x32xf32, #tpu.memory_space<vmem>>, %arg9: memref<1x1xf32, #tpu.memory_space<vmem>>, %arg10: memref<3x32x32xf32, #tpu.memory_space<vmem>>, %arg11: memref<3x32x32xf32, #tpu.memory_space<vmem>>, %arg12: memref<3x1x32xf32, #tpu.memory_space<vmem>>, %arg13: memref<3x32x32xf32, #tpu.memory_space<vmem>>, %arg14: memref<3x1x32xf32, #tpu.memory_space<vmem>>, %arg15: memref<32x64xf32, #tpu.memory_space<vmem>>, %arg16: memref<1x64xf32, #tpu.memory_space<vmem>>, %arg17: memref<2x64xf32, #tpu.memory_space<vmem>>, %arg18: memref<2x32xf32, #tpu.memory_space<vmem>>, %arg19: memref<2x8xf32, #tpu.memory_space<vmem>>) attributes {dimension_semantics = [#tpu.dimension_semantics<parallel>], iteration_bounds = array<i64: 1>, scalar_prefetch = 0 : i64, scratch_operands = 0 : i64, tpu.core_type = #tpu.core_type<tc>, window_params = [{transform_indices = @transform_0, window_bounds = array<i64: 2, 32>}, {transform_indices = @transform_1, window_bounds = array<i64: 2, 32>}, {transform_indices = @transform_2, window_bounds = array<i64: 16, 32>}, {pipeline_mode = #tpu.pipeline_mode<synchronous>, transform_indices = @transform_3, window_bounds = array<i64: 32, 32>}, {pipeline_mode = #tpu.pipeline_mode<synchronous>, transform_indices = @transform_4, window_bounds = array<i64: 1, 32>}, {pipeline_mode = #tpu.pipeline_mode<synchronous>, transform_indices = @transform_5, window_bounds = array<i64: 32, 32>}, {pipeline_mode = #tpu.pipeline_mode<synchronous>, transform_indices = @transform_6, window_bounds = array<i64: 1, 32>}, {pipeline_mode = #tpu.pipeline_mode<synchronous>, transform_indices = @transform_7, window_bounds = array<i64: 1, 32>}, {pipeline_mode = #tpu.pipeline_mode<synchronous>, transform_indices = @transform_8, window_bounds = array<i64: 1, 1>}, {pipeline_mode = #tpu.pipeline_mode<synchronous>, transform_indices = @transform_9, window_bounds = array<i64: 3, 32, 32>}, {pipeline_mode = #tpu.pipeline_mode<synchronous>, transform_indices = @transform_10, window_bounds = array<i64: 3, 32, 32>}, {pipeline_mode = #tpu.pipeline_mode<synchronous>, transform_indices = @transform_11, window_bounds = array<i64: 3, 1, 32>}, {pipeline_mode = #tpu.pipeline_mode<synchronous>, transform_indices = @transform_12, window_bounds = array<i64: 3, 32, 32>}, {pipeline_mode = #tpu.pipeline_mode<synchronous>, transform_indices = @transform_13, window_bounds = array<i64: 3, 1, 32>}, {pipeline_mode = #tpu.pipeline_mode<synchronous>, transform_indices = @transform_14, window_bounds = array<i64: 32, 64>}, {pipeline_mode = #tpu.pipeline_mode<synchronous>, transform_indices = @transform_15, window_bounds = array<i64: 1, 64>}, {transform_indices = @transform_16, window_bounds = array<i64: 2, 64>}, {transform_indices = @transform_17, window_bounds = array<i64: 2, 32>}, {transform_indices = @transform_18, window_bounds = array<i64: 2, 8>}]} {
    %c0 = arith.constant 0 : index
    %c0_0 = arith.constant 0 : index
    %0 = vector.load %arg3[%c0, %c0_0] : memref<16x32xf32, #tpu.memory_space<vmem>>, vector<16x32xf32>
    %c0_1 = arith.constant 0 : index
    %c0_2 = arith.constant 0 : index
    %1 = vector.load %arg2[%c0_1, %c0_2] : memref<2x32xf32, #tpu.memory_space<vmem>>, vector<2x32xf32>
    %c0_3 = arith.constant 0 : index
    %c0_4 = arith.constant 0 : index
    %2 = vector.load %arg1[%c0_3, %c0_4] : memref<2x32xf32, #tpu.memory_space<vmem>>, vector<2x32xf32>
    %c0_5 = arith.constant 0 : index
    %c0_6 = arith.constant 0 : index
    %3 = vector.load %arg4[%c0_5, %c0_6] : memref<32x32xf32, #tpu.memory_space<vmem>>, vector<32x32xf32>
    %cst = arith.constant dense<0.000000e+00> : vector<16x32xf32>
    %4 = tpu.matmul %0, %3, %cst {dimension_numbers = #tpu.dot_dimension_numbers<[1], [0], [0], [1], [0, 0, 1, 1], [], []>} : vector<16x32xf32>, vector<32x32xf32>, vector<16x32xf32> -> vector<16x32xf32>
    %c0_7 = arith.constant 0 : index
    %c0_8 = arith.constant 0 : index
    %5 = vector.load %arg5[%c0_7, %c0_8] : memref<1x32xf32, #tpu.memory_space<vmem>>, vector<1x32xf32>
    %6 = vector.broadcast %5 : vector<1x32xf32> to vector<16x32xf32>
    %7 = arith.addf %4, %6 : vector<16x32xf32>
    %c0_9 = arith.constant 0 : index
    %c0_10 = arith.constant 0 : index
    %8 = vector.load %arg6[%c0_9, %c0_10] : memref<32x32xf32, #tpu.memory_space<vmem>>, vector<32x32xf32>
    %cst_11 = arith.constant dense<0.000000e+00> : vector<2x32xf32>
    %9 = tpu.matmul %1, %8, %cst_11 {dimension_numbers = #tpu.dot_dimension_numbers<[1], [0], [0], [1], [0, 0, 1, 1], [], []>} : vector<2x32xf32>, vector<32x32xf32>, vector<2x32xf32> -> vector<2x32xf32>
    %c0_12 = arith.constant 0 : index
    %c0_13 = arith.constant 0 : index
    %10 = vector.load %arg7[%c0_12, %c0_13] : memref<1x32xf32, #tpu.memory_space<vmem>>, vector<1x32xf32>
    %11 = vector.broadcast %10 : vector<1x32xf32> to vector<2x32xf32>
    %12 = arith.addf %9, %11 : vector<2x32xf32>
    %13 = vector.shape_cast %7 : vector<16x32xf32> to vector<2x8x32xf32>
    %14 = vector.shape_cast %12 : vector<2x32xf32> to vector<2x1x32xf32>
    %15 = vector.broadcast %14 : vector<2x1x32xf32> to vector<2x8x32xf32>
    %16 = arith.addf %13, %15 : vector<2x8x32xf32>
    %17 = math.tanh %16 : vector<2x8x32xf32>
    %c0_14 = arith.constant 0 : index
    %c0_15 = arith.constant 0 : index
    %18 = vector.load %arg8[%c0_14, %c0_15] : memref<1x32xf32, #tpu.memory_space<vmem>>, vector<1x32xf32>
    %19 = vector.shape_cast %18 : vector<1x32xf32> to vector<1x1x32xf32>
    %20 = vector.broadcast %19 : vector<1x1x32xf32> to vector<2x8x32xf32>
    %21 = arith.mulf %17, %20 : vector<2x8x32xf32>
    %cst_16 = arith.constant dense<0.000000e+00> : vector<2x8xf32>
    %22 = vector.multi_reduction <add>, %21, %cst_16 [2] : vector<2x8x32xf32> to vector<2x8xf32>
    %c0_17 = arith.constant 0 : index
    %c0_18 = arith.constant 0 : index
    %23 = vector.load %arg9[%c0_17, %c0_18] : memref<1x1xf32, #tpu.memory_space<vmem>>, vector<1x1xf32>
    %24 = vector.broadcast %23 : vector<1x1xf32> to vector<2x8xf32>
    %25 = arith.addf %22, %24 : vector<2x8xf32>
    %cst_19 = arith.constant dense<0xFF800000> : vector<2xf32>
    %26 = vector.multi_reduction <maximumf>, %25, %cst_19 [1] : vector<2x8xf32> to vector<2xf32>
    %27 = vector.shape_cast %26 : vector<2xf32> to vector<2x1xf32>
    %28 = vector.broadcast %27 : vector<2x1xf32> to vector<2x8xf32>
    %29 = arith.subf %25, %28 : vector<2x8xf32>
    %30 = math.exp %29 : vector<2x8xf32>
    %cst_20 = arith.constant dense<0.000000e+00> : vector<2xf32>
    %31 = vector.multi_reduction <add>, %30, %cst_20 [1] : vector<2x8xf32> to vector<2xf32>
    %32 = vector.shape_cast %31 : vector<2xf32> to vector<2x1xf32>
    %33 = vector.broadcast %32 : vector<2x1xf32> to vector<2x8xf32>
    %34 = arith.divf %30, %33 : vector<2x8xf32>
    %35 = vector.shape_cast %0 : vector<16x32xf32> to vector<2x8x32xf32>
    %36 = vector.shape_cast %34 : vector<2x8xf32> to vector<2x1x8xf32>
    "tpu.trace_start"() <{level = 10 : i32, message = "bqs,bsh->bqh"}> : () -> ()
    %cst_21 = arith.constant dense<0.000000e+00> : vector<2x1x32xf32>
    %37 = tpu.matmul %36, %35, %cst_21 {dimension_numbers = #tpu.dot_dimension_numbers<[2], [1], [1], [2], [0, 0, 0, 1, 1, 2], [0], [0]>} : vector<2x1x8xf32>, vector<2x8x32xf32>, vector<2x1x32xf32> -> vector<2x1x32xf32>
    "tpu.trace_stop"() : () -> ()
    %38 = vector.shape_cast %37 : vector<2x1x32xf32> to vector<2x32xf32>
    %c0_22 = arith.constant 0 : index
    %c0_23 = arith.constant 0 : index
    %c0_24 = arith.constant 0 : index
    %39 = vector.load %arg10[%c0_22, %c0_23, %c0_24] : memref<3x32x32xf32, #tpu.memory_space<vmem>>, vector<1x32x32xf32>
    %40 = vector.shape_cast %39 : vector<1x32x32xf32> to vector<32x32xf32>
    %cst_25 = arith.constant dense<0.000000e+00> : vector<2x32xf32>
    %41 = tpu.matmul %2, %40, %cst_25 {dimension_numbers = #tpu.dot_dimension_numbers<[1], [0], [0], [1], [0, 0, 1, 1], [], []>} : vector<2x32xf32>, vector<32x32xf32>, vector<2x32xf32> -> vector<2x32xf32>
    %c0_26 = arith.constant 0 : index
    %c0_27 = arith.constant 0 : index
    %c0_28 = arith.constant 0 : index
    %42 = vector.load %arg11[%c0_26, %c0_27, %c0_28] : memref<3x32x32xf32, #tpu.memory_space<vmem>>, vector<1x32x32xf32>
    %43 = vector.shape_cast %42 : vector<1x32x32xf32> to vector<32x32xf32>
    %cst_29 = arith.constant dense<0.000000e+00> : vector<2x32xf32>
    %44 = tpu.matmul %38, %43, %cst_29 {dimension_numbers = #tpu.dot_dimension_numbers<[1], [0], [0], [1], [0, 0, 1, 1], [], []>} : vector<2x32xf32>, vector<32x32xf32>, vector<2x32xf32> -> vector<2x32xf32>
    %45 = arith.addf %41, %44 : vector<2x32xf32>
    %c0_30 = arith.constant 0 : index
    %c0_31 = arith.constant 0 : index
    %c0_32 = arith.constant 0 : index
    %46 = vector.load %arg12[%c0_30, %c0_31, %c0_32] : memref<3x1x32xf32, #tpu.memory_space<vmem>>, vector<1x1x32xf32>
    %47 = vector.shape_cast %46 : vector<1x1x32xf32> to vector<1x32xf32>
    %48 = vector.broadcast %47 : vector<1x32xf32> to vector<2x32xf32>
    %49 = arith.addf %45, %48 : vector<2x32xf32>
    %c0_33 = arith.constant 0 : index
    %c0_34 = arith.constant 0 : index
    %c0_35 = arith.constant 0 : index
    %50 = vector.load %arg13[%c0_33, %c0_34, %c0_35] : memref<3x32x32xf32, #tpu.memory_space<vmem>>, vector<1x32x32xf32>
    %51 = vector.shape_cast %50 : vector<1x32x32xf32> to vector<32x32xf32>
    %cst_36 = arith.constant dense<0.000000e+00> : vector<2x32xf32>
    %52 = tpu.matmul %1, %51, %cst_36 {dimension_numbers = #tpu.dot_dimension_numbers<[1], [0], [0], [1], [0, 0, 1, 1], [], []>} : vector<2x32xf32>, vector<32x32xf32>, vector<2x32xf32> -> vector<2x32xf32>
    %c0_37 = arith.constant 0 : index
    %c0_38 = arith.constant 0 : index
    %c0_39 = arith.constant 0 : index
    %53 = vector.load %arg14[%c0_37, %c0_38, %c0_39] : memref<3x1x32xf32, #tpu.memory_space<vmem>>, vector<1x1x32xf32>
    %54 = vector.shape_cast %53 : vector<1x1x32xf32> to vector<1x32xf32>
    %55 = vector.broadcast %54 : vector<1x32xf32> to vector<2x32xf32>
    %56 = arith.addf %52, %55 : vector<2x32xf32>
    %57 = arith.addf %49, %56 : vector<2x32xf32>
    %58 = arith.negf %57 : vector<2x32xf32>
    %59 = math.exp %58 : vector<2x32xf32>
    %cst_40 = arith.constant 1.000000e+00 : f32
    %60 = vector.broadcast %cst_40 : f32 to vector<2x32xf32>
    %61 = arith.addf %60, %59 : vector<2x32xf32>
    %62 = arith.divf %60, %61 : vector<2x32xf32>
    %c1 = arith.constant 1 : index
    %c0_41 = arith.constant 0 : index
    %c0_42 = arith.constant 0 : index
    %63 = vector.load %arg10[%c1, %c0_41, %c0_42] : memref<3x32x32xf32, #tpu.memory_space<vmem>>, vector<1x32x32xf32>
    %64 = vector.shape_cast %63 : vector<1x32x32xf32> to vector<32x32xf32>
    %cst_43 = arith.constant dense<0.000000e+00> : vector<2x32xf32>
    %65 = tpu.matmul %2, %64, %cst_43 {dimension_numbers = #tpu.dot_dimension_numbers<[1], [0], [0], [1], [0, 0, 1, 1], [], []>} : vector<2x32xf32>, vector<32x32xf32>, vector<2x32xf32> -> vector<2x32xf32>
    %c1_44 = arith.constant 1 : index
    %c0_45 = arith.constant 0 : index
    %c0_46 = arith.constant 0 : index
    %66 = vector.load %arg11[%c1_44, %c0_45, %c0_46] : memref<3x32x32xf32, #tpu.memory_space<vmem>>, vector<1x32x32xf32>
    %67 = vector.shape_cast %66 : vector<1x32x32xf32> to vector<32x32xf32>
    %cst_47 = arith.constant dense<0.000000e+00> : vector<2x32xf32>
    %68 = tpu.matmul %38, %67, %cst_47 {dimension_numbers = #tpu.dot_dimension_numbers<[1], [0], [0], [1], [0, 0, 1, 1], [], []>} : vector<2x32xf32>, vector<32x32xf32>, vector<2x32xf32> -> vector<2x32xf32>
    %69 = arith.addf %65, %68 : vector<2x32xf32>
    %c1_48 = arith.constant 1 : index
    %c0_49 = arith.constant 0 : index
    %c0_50 = arith.constant 0 : index
    %70 = vector.load %arg12[%c1_48, %c0_49, %c0_50] : memref<3x1x32xf32, #tpu.memory_space<vmem>>, vector<1x1x32xf32>
    %71 = vector.shape_cast %70 : vector<1x1x32xf32> to vector<1x32xf32>
    %72 = vector.broadcast %71 : vector<1x32xf32> to vector<2x32xf32>
    %73 = arith.addf %69, %72 : vector<2x32xf32>
    %c1_51 = arith.constant 1 : index
    %c0_52 = arith.constant 0 : index
    %c0_53 = arith.constant 0 : index
    %74 = vector.load %arg13[%c1_51, %c0_52, %c0_53] : memref<3x32x32xf32, #tpu.memory_space<vmem>>, vector<1x32x32xf32>
    %75 = vector.shape_cast %74 : vector<1x32x32xf32> to vector<32x32xf32>
    %cst_54 = arith.constant dense<0.000000e+00> : vector<2x32xf32>
    %76 = tpu.matmul %1, %75, %cst_54 {dimension_numbers = #tpu.dot_dimension_numbers<[1], [0], [0], [1], [0, 0, 1, 1], [], []>} : vector<2x32xf32>, vector<32x32xf32>, vector<2x32xf32> -> vector<2x32xf32>
    %c1_55 = arith.constant 1 : index
    %c0_56 = arith.constant 0 : index
    %c0_57 = arith.constant 0 : index
    %77 = vector.load %arg14[%c1_55, %c0_56, %c0_57] : memref<3x1x32xf32, #tpu.memory_space<vmem>>, vector<1x1x32xf32>
    %78 = vector.shape_cast %77 : vector<1x1x32xf32> to vector<1x32xf32>
    %79 = vector.broadcast %78 : vector<1x32xf32> to vector<2x32xf32>
    %80 = arith.addf %76, %79 : vector<2x32xf32>
    %81 = arith.addf %73, %80 : vector<2x32xf32>
    %82 = arith.negf %81 : vector<2x32xf32>
    %83 = math.exp %82 : vector<2x32xf32>
    %cst_58 = arith.constant 1.000000e+00 : f32
    %84 = vector.broadcast %cst_58 : f32 to vector<2x32xf32>
    %85 = arith.addf %84, %83 : vector<2x32xf32>
    %86 = arith.divf %84, %85 : vector<2x32xf32>
    %c2 = arith.constant 2 : index
    %c0_59 = arith.constant 0 : index
    %c0_60 = arith.constant 0 : index
    %87 = vector.load %arg10[%c2, %c0_59, %c0_60] : memref<3x32x32xf32, #tpu.memory_space<vmem>>, vector<1x32x32xf32>
    %88 = vector.shape_cast %87 : vector<1x32x32xf32> to vector<32x32xf32>
    %cst_61 = arith.constant dense<0.000000e+00> : vector<2x32xf32>
    %89 = tpu.matmul %2, %88, %cst_61 {dimension_numbers = #tpu.dot_dimension_numbers<[1], [0], [0], [1], [0, 0, 1, 1], [], []>} : vector<2x32xf32>, vector<32x32xf32>, vector<2x32xf32> -> vector<2x32xf32>
    %c2_62 = arith.constant 2 : index
    %c0_63 = arith.constant 0 : index
    %c0_64 = arith.constant 0 : index
    %90 = vector.load %arg11[%c2_62, %c0_63, %c0_64] : memref<3x32x32xf32, #tpu.memory_space<vmem>>, vector<1x32x32xf32>
    %91 = vector.shape_cast %90 : vector<1x32x32xf32> to vector<32x32xf32>
    %cst_65 = arith.constant dense<0.000000e+00> : vector<2x32xf32>
    %92 = tpu.matmul %38, %91, %cst_65 {dimension_numbers = #tpu.dot_dimension_numbers<[1], [0], [0], [1], [0, 0, 1, 1], [], []>} : vector<2x32xf32>, vector<32x32xf32>, vector<2x32xf32> -> vector<2x32xf32>
    %93 = arith.addf %89, %92 : vector<2x32xf32>
    %c2_66 = arith.constant 2 : index
    %c0_67 = arith.constant 0 : index
    %c0_68 = arith.constant 0 : index
    %94 = vector.load %arg12[%c2_66, %c0_67, %c0_68] : memref<3x1x32xf32, #tpu.memory_space<vmem>>, vector<1x1x32xf32>
    %95 = vector.shape_cast %94 : vector<1x1x32xf32> to vector<1x32xf32>
    %96 = vector.broadcast %95 : vector<1x32xf32> to vector<2x32xf32>
    %97 = arith.addf %93, %96 : vector<2x32xf32>
    %c2_69 = arith.constant 2 : index
    %c0_70 = arith.constant 0 : index
    %c0_71 = arith.constant 0 : index
    %98 = vector.load %arg13[%c2_69, %c0_70, %c0_71] : memref<3x32x32xf32, #tpu.memory_space<vmem>>, vector<1x32x32xf32>
    %99 = vector.shape_cast %98 : vector<1x32x32xf32> to vector<32x32xf32>
    %cst_72 = arith.constant dense<0.000000e+00> : vector<2x32xf32>
    %100 = tpu.matmul %1, %99, %cst_72 {dimension_numbers = #tpu.dot_dimension_numbers<[1], [0], [0], [1], [0, 0, 1, 1], [], []>} : vector<2x32xf32>, vector<32x32xf32>, vector<2x32xf32> -> vector<2x32xf32>
    %c2_73 = arith.constant 2 : index
    %c0_74 = arith.constant 0 : index
    %c0_75 = arith.constant 0 : index
    %101 = vector.load %arg14[%c2_73, %c0_74, %c0_75] : memref<3x1x32xf32, #tpu.memory_space<vmem>>, vector<1x1x32xf32>
    %102 = vector.shape_cast %101 : vector<1x1x32xf32> to vector<1x32xf32>
    %103 = vector.broadcast %102 : vector<1x32xf32> to vector<2x32xf32>
    %104 = arith.addf %100, %103 : vector<2x32xf32>
    %105 = arith.mulf %62, %104 : vector<2x32xf32>
    %106 = arith.addf %97, %105 : vector<2x32xf32>
    %107 = math.tanh %106 : vector<2x32xf32>
    %cst_76 = arith.constant 1.000000e+00 : f32
    %108 = vector.broadcast %cst_76 : f32 to vector<2x32xf32>
    %109 = arith.subf %108, %86 : vector<2x32xf32>
    %110 = arith.mulf %109, %107 : vector<2x32xf32>
    %111 = arith.mulf %86, %1 : vector<2x32xf32>
    %112 = arith.addf %110, %111 : vector<2x32xf32>
    %c0_77 = arith.constant 0 : index
    %c0_78 = arith.constant 0 : index
    %113 = vector.load %arg15[%c0_77, %c0_78] : memref<32x64xf32, #tpu.memory_space<vmem>>, vector<32x64xf32>
    %cst_79 = arith.constant dense<0.000000e+00> : vector<2x64xf32>
    %114 = tpu.matmul %112, %113, %cst_79 {dimension_numbers = #tpu.dot_dimension_numbers<[1], [0], [0], [1], [0, 0, 1, 1], [], []>} : vector<2x32xf32>, vector<32x64xf32>, vector<2x64xf32> -> vector<2x64xf32>
    %c0_80 = arith.constant 0 : index
    %c0_81 = arith.constant 0 : index
    %115 = vector.load %arg16[%c0_80, %c0_81] : memref<1x64xf32, #tpu.memory_space<vmem>>, vector<1x64xf32>
    %116 = vector.broadcast %115 : vector<1x64xf32> to vector<2x64xf32>
    %117 = arith.addf %114, %116 : vector<2x64xf32>
    %c0_82 = arith.constant 0 : index
    %c0_83 = arith.constant 0 : index
    %118 = vector.load %arg17[%c0_82, %c0_83] : memref<2x64xf32, #tpu.memory_space<vmem>>, vector<2x64xf32>
    tpu.vector_store %arg17[%c0_82, %c0_83], %117 {strides = array<i32>} : memref<2x64xf32, #tpu.memory_space<vmem>>, vector<2x64xf32>,
    %c0_84 = arith.constant 0 : index
    %c0_85 = arith.constant 0 : index
    %119 = vector.load %arg18[%c0_84, %c0_85] : memref<2x32xf32, #tpu.memory_space<vmem>>, vector<2x32xf32>
    tpu.vector_store %arg18[%c0_84, %c0_85], %112 {strides = array<i32>} : memref<2x32xf32, #tpu.memory_space<vmem>>, vector<2x32xf32>,
    %c0_86 = arith.constant 0 : index
    %c0_87 = arith.constant 0 : index
    %120 = vector.load %arg19[%c0_86, %c0_87] : memref<2x8xf32, #tpu.memory_space<vmem>>, vector<2x8xf32>
    tpu.vector_store %arg19[%c0_86, %c0_87], %34 {strides = array<i32>} : memref<2x8xf32, #tpu.memory_space<vmem>>, vector<2x8xf32>,
    return
  }
  func.func @transform_0(%arg0: i32) -> (i32, i32) {
    %c0_i32 = arith.constant 0 : i32
    %c0_i32_0 = arith.constant 0 : i32
    return %arg0, %c0_i32 : i32, i32
  }
  func.func @transform_1(%arg0: i32) -> (i32, i32) {
    %c0_i32 = arith.constant 0 : i32
    %c0_i32_0 = arith.constant 0 : i32
    return %arg0, %c0_i32 : i32, i32
  }
  func.func @transform_2(%arg0: i32) -> (i32, i32) {
    %c0_i32 = arith.constant 0 : i32
    %c0_i32_0 = arith.constant 0 : i32
    return %arg0, %c0_i32 : i32, i32
  }
  func.func @transform_3(%arg0: i32) -> (i32, i32) {
    %c0_i32 = arith.constant 0 : i32
    %c0_i32_0 = arith.constant 0 : i32
    %c0_i32_1 = arith.constant 0 : i32
    return %c0_i32, %c0_i32_0 : i32, i32
  }
  func.func @transform_4(%arg0: i32) -> (i32, i32) {
    %c0_i32 = arith.constant 0 : i32
    %c0_i32_0 = arith.constant 0 : i32
    %c0_i32_1 = arith.constant 0 : i32
    return %c0_i32, %c0_i32_0 : i32, i32
  }
  func.func @transform_5(%arg0: i32) -> (i32, i32) {
    %c0_i32 = arith.constant 0 : i32
    %c0_i32_0 = arith.constant 0 : i32
    %c0_i32_1 = arith.constant 0 : i32
    return %c0_i32, %c0_i32_0 : i32, i32
  }
  func.func @transform_6(%arg0: i32) -> (i32, i32) {
    %c0_i32 = arith.constant 0 : i32
    %c0_i32_0 = arith.constant 0 : i32
    %c0_i32_1 = arith.constant 0 : i32
    return %c0_i32, %c0_i32_0 : i32, i32
  }
  func.func @transform_7(%arg0: i32) -> (i32, i32) {
    %c0_i32 = arith.constant 0 : i32
    %c0_i32_0 = arith.constant 0 : i32
    %c0_i32_1 = arith.constant 0 : i32
    return %c0_i32, %c0_i32_0 : i32, i32
  }
  func.func @transform_8(%arg0: i32) -> (i32, i32) {
    %c0_i32 = arith.constant 0 : i32
    %c0_i32_0 = arith.constant 0 : i32
    %c0_i32_1 = arith.constant 0 : i32
    return %c0_i32, %c0_i32_0 : i32, i32
  }
  func.func @transform_9(%arg0: i32) -> (i32, i32, i32) {
    %c0_i32 = arith.constant 0 : i32
    %c0_i32_0 = arith.constant 0 : i32
    %c0_i32_1 = arith.constant 0 : i32
    %c0_i32_2 = arith.constant 0 : i32
    return %c0_i32, %c0_i32_0, %c0_i32_1 : i32, i32, i32
  }
  func.func @transform_10(%arg0: i32) -> (i32, i32, i32) {
    %c0_i32 = arith.constant 0 : i32
    %c0_i32_0 = arith.constant 0 : i32
    %c0_i32_1 = arith.constant 0 : i32
    %c0_i32_2 = arith.constant 0 : i32
    return %c0_i32, %c0_i32_0, %c0_i32_1 : i32, i32, i32
  }
  func.func @transform_11(%arg0: i32) -> (i32, i32, i32) {
    %c0_i32 = arith.constant 0 : i32
    %c0_i32_0 = arith.constant 0 : i32
    %c0_i32_1 = arith.constant 0 : i32
    %c0_i32_2 = arith.constant 0 : i32
    return %c0_i32, %c0_i32_0, %c0_i32_1 : i32, i32, i32
  }
  func.func @transform_12(%arg0: i32) -> (i32, i32, i32) {
    %c0_i32 = arith.constant 0 : i32
    %c0_i32_0 = arith.constant 0 : i32
    %c0_i32_1 = arith.constant 0 : i32
    %c0_i32_2 = arith.constant 0 : i32
    return %c0_i32, %c0_i32_0, %c0_i32_1 : i32, i32, i32
  }
  func.func @transform_13(%arg0: i32) -> (i32, i32, i32) {
    %c0_i32 = arith.constant 0 : i32
    %c0_i32_0 = arith.constant 0 : i32
    %c0_i32_1 = arith.constant 0 : i32
    %c0_i32_2 = arith.constant 0 : i32
    return %c0_i32, %c0_i32_0, %c0_i32_1 : i32, i32, i32
  }
  func.func @transform_14(%arg0: i32) -> (i32, i32) {
    %c0_i32 = arith.constant 0 : i32
    %c0_i32_0 = arith.constant 0 : i32
    %c0_i32_1 = arith.constant 0 : i32
    return %c0_i32, %c0_i32_0 : i32, i32
  }
  func.func @transform_15(%arg0: i32) -> (i32, i32) {
    %c0_i32 = arith.constant 0 : i32
    %c0_i32_0 = arith.constant 0 : i32
    %c0_i32_1 = arith.constant 0 : i32
    return %c0_i32, %c0_i32_0 : i32, i32
  }
  func.func @transform_16(%arg0: i32) -> (i32, i32) {
    %c0_i32 = arith.constant 0 : i32
    %c0_i32_0 = arith.constant 0 : i32
    return %arg0, %c0_i32 : i32, i32
  }
  func.func @transform_17(%arg0: i32) -> (i32, i32) {
    %c0_i32 = arith.constant 0 : i32
    %c0_i32_0 = arith.constant 0 : i32
    return %arg0, %c0_i32 : i32, i32
  }
  func.func @transform_18(%arg0: i32) -> (i32, i32) {
    %c0_i32 = arith.constant 0 : i32
    %c0_i32_0 = arith.constant 0 : i32
    return %arg0, %c0_i32 : i32, i32
  }
}

</mosaic_0001>

<llo_original>
// kernel: decoder_forward.1
$region0: #{decoder_forward.1}
  #allocation0 [shape = 'u32[]', space=smem, size = 0x4, offset = 0x4, fixed_abs, tag = 'smem constant byte address 0x4 - core index']
  #allocation1 [shape = 'u32[144,128]{1,0:T(1,128)}', space=vmem, size = 0x12000, scoped, tag = 'internal scratch']
  #allocation2 [shape = 'f32[1,1]{1,0:T(1,128)S(1)}', space=vmem, size = 0x200, scoped, tag = 'scoped memory for decoder_forward.1']
  %s0 = inlined_call_operand.vmem [shape: f32[2,32], index: 0, kind: input, shape index: {}]
  %s1 = inlined_call_operand.vmem [shape: f32[2,32], index: 1, kind: input, shape index: {}, may-alias: {1,17}]
  %s2 = inlined_call_operand.vmem [shape: f32[16,32], index: 2, kind: input, shape index: {}]
  %s3 = inlined_call_operand.vmem [shape: f32[32,32], index: 3, kind: input, shape index: {}]
  %s4 = inlined_call_operand.vmem [shape: f32[1,32], index: 4, kind: input, shape index: {}]
  %s5 = inlined_call_operand.vmem [shape: f32[32,32], index: 5, kind: input, shape index: {}]
  %s6 = inlined_call_operand.vmem [shape: f32[1,32], index: 6, kind: input, shape index: {}]
  %s7 = inlined_call_operand.vmem [shape: f32[1,32], index: 7, kind: input, shape index: {}]
  %s8 = inlined_call_operand.<no memory space> [shape: f32[1,1], index: 8, kind: input, shape index: {}]
  %s9 = inlined_call_operand.vmem [shape: f32[3,32,32], index: 9, kind: input, shape index: {}]
  %s10 = inlined_call_operand.vmem [shape: f32[3,32,32], index: 10, kind: input, shape index: {}]
  %s11 = inlined_call_operand.vmem [shape: f32[3,1,32], index: 11, kind: input, shape index: {}]
  %s12 = inlined_call_operand.vmem [shape: f32[3,32,32], index: 12, kind: input, shape index: {}]
  %s13 = inlined_call_operand.vmem [shape: f32[3,1,32], index: 13, kind: input, shape index: {}]
  %s14 = inlined_call_operand.vmem [shape: f32[32,64], index: 14, kind: input, shape index: {}]
  %s15 = inlined_call_operand.vmem [shape: f32[1,64], index: 15, kind: input, shape index: {}]
  %s16 = inlined_call_operand.hbm [shape: f32[2,64], index: 16, kind: output, shape index: {0}]
  %s17 = inlined_call_operand.vmem [shape: f32[2,32], index: 17, kind: output, shape index: {1}, may-alias: {1,17}]
  %s18 = inlined_call_operand.hbm [shape: f32[2,8], index: 18, kind: output, shape index: {2}]
  %19 = xla_tuple %s16, %s17, %s18
  %s20 = sld [smem:[#allocation0]]
  $region90: #{decoder_forward.1} parent=0
    _
  %s22 = ssub.s32 1, %s20
  %s23 = scalar_select 0, %s22, %s20
  %v24 = vstv %s8
  %25 = vst [vmem:[#allocation2] sm:$0x1] %v24
  $region1: #{decoder_forward.1} parent=0
    #allocation3 [shape = 'u8[1024]{0}', space=vmem, size = 0x400, scoped, tag = 'output window, operand 0, single buffered']
    #allocation4 [shape = 's32[1]{0}', space=sflag, size = 0x4, scoped, tag = 'scoped memory for decoder_forward.1']
    #allocation5 [shape = 'u8[1024]{0}', space=vmem, size = 0x400, scoped, tag = 'output window, operand 2, single buffered']
    #allocation6 [shape = 's32[1]{0}', space=sflag, size = 0x4, scoped, tag = 'scoped memory for decoder_forward.1']
    %26 = vsyncpa [#allocation4], 0
    %27 = vsyncpa [#allocation6], 0
    // Predicated region
    $region2: #{decoder_forward.1} parent=1 // pred_check
      _
    $region3: #{decoder_forward.1} parent=1 // pred_check_branch
      %29 = sbr.rel (0) target = $region5
    $region4: #{decoder_forward.1} parent=1 // pred_region
      _
    $region5: #{decoder_forward.1} parent=1 // pred_fallthru
      _
    // Predicated region
    $region6: #{decoder_forward.1} parent=1 // pred_check
      _
    $region7: #{decoder_forward.1} parent=1 // pred_check_branch
      %31 = sbr.rel (0) target = $region9
    $region8: #{decoder_forward.1} parent=1 // pred_region
      _
    $region9: #{decoder_forward.1} parent=1 // pred_fallthru
      _
    // Predicated region
    $region10: #{decoder_forward.1} parent=1 // pred_check
      _
    $region11: #{decoder_forward.1} parent=1 // pred_check_branch
      %33 = sbr.rel (0) target = $region13
    $region12: #{decoder_forward.1} parent=1 // pred_region
      _
    $region13: #{decoder_forward.1} parent=1 // pred_fallthru
      _
    // Predicated region
    $region14: #{decoder_forward.1} parent=1 // pred_check
      _
    $region15: #{decoder_forward.1} parent=1 // pred_check_branch
      %35 = sbr.rel (0) target = $region17
    $region16: #{decoder_forward.1} parent=1 // pred_region
      _
    $region17: #{decoder_forward.1} parent=1 // pred_fallthru
      _
    // Predicated region
    $region18: #{decoder_forward.1} parent=1 // pred_check
      _
    $region19: #{decoder_forward.1} parent=1 // pred_check_branch
      %37 = sbr.rel (0) target = $region21
    $region20: #{decoder_forward.1} parent=1 // pred_region
      _
    $region21: #{decoder_forward.1} parent=1 // pred_fallthru
      _
    // Predicated region
    $region22: #{decoder_forward.1} parent=1 // pred_check
      _
    $region23: #{decoder_forward.1} parent=1 // pred_check_branch
      %39 = sbr.rel (0) target = $region25
    $region24: #{decoder_forward.1} parent=1 // pred_region
      _
    $region25: #{decoder_forward.1} parent=1 // pred_fallthru
      _
    // Predicated region
    $region26: #{decoder_forward.1} parent=1 // pred_check
      _
    $region27: #{decoder_forward.1} parent=1 // pred_check_branch
      %41 = sbr.rel (0) target = $region29
    $region28: #{decoder_forward.1} parent=1 // pred_region
      _
    $region29: #{decoder_forward.1} parent=1 // pred_fallthru
      _
    // Predicated region
    $region30: #{decoder_forward.1} parent=1 // pred_check
      _
    $region31: #{decoder_forward.1} parent=1 // pred_check_branch
      %43 = sbr.rel (0) target = $region33
    $region32: #{decoder_forward.1} parent=1 // pred_region
      _
    $region33: #{decoder_forward.1} parent=1 // pred_fallthru
      _
    // Predicated region
    $region34: #{decoder_forward.1} parent=1 // pred_check
      _
    $region35: #{decoder_forward.1} parent=1 // pred_check_branch
      %45 = sbr.rel (0) target = $region37
    $region36: #{decoder_forward.1} parent=1 // pred_region
      _
    $region37: #{decoder_forward.1} parent=1 // pred_fallthru
      _
    // Predicated region
    $region38: #{decoder_forward.1} parent=1 // pred_check
      _
    $region39: #{decoder_forward.1} parent=1 // pred_check_branch
      %47 = sbr.rel (0) target = $region41
    $region40: #{decoder_forward.1} parent=1 // pred_region
      _
    $region41: #{decoder_forward.1} parent=1 // pred_fallthru
      _
    // Predicated region
    $region42: #{decoder_forward.1} parent=1 // pred_check
      _
    $region43: #{decoder_forward.1} parent=1 // pred_check_branch
      %49 = sbr.rel (0) target = $region45
    $region44: #{decoder_forward.1} parent=1 // pred_region
      _
    $region45: #{decoder_forward.1} parent=1 // pred_fallthru
      _
    // Predicated region
    $region46: #{decoder_forward.1} parent=1 // pred_check
      _
    $region47: #{decoder_forward.1} parent=1 // pred_check_branch
      %51 = sbr.rel (0) target = $region49
    $region48: #{decoder_forward.1} parent=1 // pred_region
      _
    $region49: #{decoder_forward.1} parent=1 // pred_fallthru
      _
    // Predicated region
    $region50: #{decoder_forward.1} parent=1 // pred_check
      _
    $region51: #{decoder_forward.1} parent=1 // pred_check_branch
      %53 = sbr.rel (0) target = $region53
    $region52: #{decoder_forward.1} parent=1 // pred_region
      _
    $region53: #{decoder_forward.1} parent=1 // pred_fallthru
      _
    // Predicated region
    $region54: #{decoder_forward.1} parent=1 // pred_check
      _
    $region55: #{decoder_forward.1} parent=1 // pred_check_branch
      %55 = sbr.rel (0) target = $region57
    $region56: #{decoder_forward.1} parent=1 // pred_region
      _
    $region57: #{decoder_forward.1} parent=1 // pred_fallthru
      _
    // Predicated region
    $region58: #{decoder_forward.1} parent=1 // pred_check
      _
    $region59: #{decoder_forward.1} parent=1 // pred_check_branch
      %57 = sbr.rel (0) target = $region61
    $region60: #{decoder_forward.1} parent=1 // pred_region
      _
    $region61: #{decoder_forward.1} parent=1 // pred_fallthru
      _
    // Predicated region
    $region62: #{decoder_forward.1} parent=1 // pred_check
      _
    $region63: #{decoder_forward.1} parent=1 // pred_check_branch
      %59 = sbr.rel (0) target = $region65
    $region64: #{decoder_forward.1} parent=1 // pred_region
      _
    $region65: #{decoder_forward.1} parent=1 // pred_fallthru
      _
    %v60 = vld [vmem:[%s2] sm:$0xff]
    %v61 = vld [vmem:[%s2 + $0x8] sm:$0xff]
    %v62 = vld [vmem:[%s1] sm:$0x3]
    %v63 = vld [vmem:[%s0] sm:$0x3]
    %v64 = vld [vmem:[%s3] sm:$0xff]
    %v65 = vld [vmem:[%s3 + $0x8] sm:$0xff]
    %v66 = vld [vmem:[%s3 + $0x10] sm:$0xff]
    %v67 = vld [vmem:[%s3 + $0x18] sm:$0xff]
    %v68 = vld [vmem:[%s4] sm:$0x1]
    %v70 = vlaneseq
    %v71 = vshrl.u32 %v70, 7
    %v72 = vsub.s32 0, %v71
    %v73 = vrot.slane %v68, %v72
    %vm75 = vcmask 261120
    %v77 = vsel %vm75, %v60, 0
    %v80 = vsel %vm75, %v61, 0
    %82 = vmatprep.subr.mxu0 0.0
    %83 = vmatpush1.msra.mxu0 %v64
    %84 = vmatprep.subr.mxu0 0.0
    %85 = vmatpush1.msra.mxu0 %v65
    %86 = vmatprep.subr.mxu0 0.0
    %87 = vmatpush1.msra.mxu0 %v66
    %88 = vmatprep.subr.mxu0 0.0
    %89 = vmatpush1.msra.mxu0 %v67
    %90 = vmatprep.subr.mxu0 0.0
    %91 = vmatpush1.msra.mxu0 0.0
    %92 = vmatprep.subr.mxu0 0.0
    %93 = vmatpush1.msra.mxu0 0.0
    %94 = vmatprep.subr.mxu0 0.0
    %95 = vmatpush1.msra.mxu0 0.0
    %96 = vmatprep.subr.mxu0 0.0
    %97 = vmatpush1.msra.mxu0 0.0
    %98 = vmatprep.subr.mxu0 0.0
    %99 = vmatpush1.msra.mxu0 0.0
    %100 = vmatprep.subr.mxu0 0.0
    %101 = vmatpush1.msra.mxu0 0.0
    %102 = vmatprep.subr.mxu0 0.0
    %103 = vmatpush1.msra.mxu0 0.0
    %104 = vmatprep.subr.mxu0 0.0
    %105 = vmatpush1.msra.mxu0 0.0
    %106 = vmatprep.subr.mxu0 0.0
    %107 = vmatpush1.msra.mxu0 0.0
    %108 = vmatprep.subr.mxu0 0.0
    %109 = vmatpush1.msra.mxu0 0.0
    %110 = vmatprep.subr.mxu0 0.0
    %111 = vmatpush1.msra.mxu0 0.0
    %112 = vmatprep.subr.mxu0 0.0
    %113 = vmatpush1.msra.mxu0 0.0
    %114 = vmatprep.subr.mxu0 0.0
    %115 = vmatpush1.msra.mxu0 0.0
    %116 = vmatprep.subr.mxu0 0.0
    %117 = vmatpush1.msra.mxu0 0.0
    %118 = vmatprep.subr.mxu0 0.0
    %119 = vmatpush1.msra.mxu0 0.0
    %120 = vmatprep.subr.mxu0 0.0
    %121 = vmatpush1.msra.mxu0 0.0
    %122 = vmatprep.subr.mxu0 0.0
    %123 = vmatpush1.msra.mxu0 0.0
    %124 = vmatprep.subr.mxu0 0.0
    %125 = vmatpush1.msra.mxu0 0.0
    %126 = vmatprep.subr.mxu0 0.0
    %127 = vmatpush1.msra.mxu0 0.0
    %128 = vmatprep.subr.mxu0 0.0
    %129 = vmatpush1.msra.mxu0 0.0
    %130 = vmatprep.subr.mxu0 0.0
    %131 = vmatpush1.msra.mxu0 0.0
    %132 = vmatprep.subr.mxu0 0.0
    %133 = vmatpush1.msra.mxu0 0.0
    %134 = vmatprep.subr.mxu0 0.0
    %135 = vmatpush1.msra.mxu0 0.0
    %136 = vmatprep.subr.mxu0 0.0
    %137 = vmatpush1.msra.mxu0 0.0
    %138 = vmatprep.subr.mxu0 0.0
    %139 = vmatpush1.msra.mxu0 0.0
    %140 = vmatprep.subr.mxu0 0.0
    %141 = vmatpush1.msra.mxu0 0.0
    %142 = vmatprep.subr.mxu0 0.0
    %143 = vmatpush1.msra.mxu0 0.0
    %144 = vmatprep.subr.mxu0 0.0
    %145 = vmatpush1.msra.mxu0 0.0
    %146 = vmatprep.mubr.f32.mxu0 0.0
    %147 = vmatmul.mubr.f32.gmra.mrb[0].mxu0 %v77
    %v148 = vpop.f32.mrb[0].mxu0
    %v149 = vadd.f32 %v73, %v148
    %v150 = vpop.f32.mrb[0].mxu0
    %151 = vmatprep.mubr.f32.mxu0 0.0
    %152 = vmatmul.mubr.f32.gmra.mrb[0].mxu0 %v80
    %v153 = vpop.f32.mrb[0].mxu0
    %v154 = vadd.f32 %v73, %v153
    %v155 = vpop.f32.mrb[0].mxu0
    %156 = vdwg.mxu0
    %v157 = vld [vmem:[%s5] sm:$0xff]
    %v158 = vld [vmem:[%s5 + $0x8] sm:$0xff]
    %v159 = vld [vmem:[%s5 + $0x10] sm:$0xff]
    %v160 = vld [vmem:[%s5 + $0x18] sm:$0xff]
    %v161 = vld [vmem:[%s6] sm:$0x1]
    %v163 = vlaneseq
    %v164 = vshrl.u32 %v163, 7
    %v165 = vsub.s32 0, %v164
    %v166 = vrot.slane %v161, %v165
    %v169 = vsel %vm75, %v62, 0
    %171 = vmatprep.subr.mxu0 0.0
    %172 = vmatpush1.msra.mxu0 %v157
    %173 = vmatprep.subr.mxu0 0.0
    %174 = vmatpush1.msra.mxu0 %v158
    %175 = vmatprep.subr.mxu0 0.0
    %176 = vmatpush1.msra.mxu0 %v159
    %177 = vmatprep.subr.mxu0 0.0
    %178 = vmatpush1.msra.mxu0 %v160
    %179 = vmatprep.subr.mxu0 0.0
    %180 = vmatpush1.msra.mxu0 0.0
    %181 = vmatprep.subr.mxu0 0.0
    %182 = vmatpush1.msra.mxu0 0.0
    %183 = vmatprep.subr.mxu0 0.0
    %184 = vmatpush1.msra.mxu0 0.0
    %185 = vmatprep.subr.mxu0 0.0
    %186 = vmatpush1.msra.mxu0 0.0
    %187 = vmatprep.subr.mxu0 0.0
    %188 = vmatpush1.msra.mxu0 0.0
    %189 = vmatprep.subr.mxu0 0.0
    %190 = vmatpush1.msra.mxu0 0.0
    %191 = vmatprep.subr.mxu0 0.0
    %192 = vmatpush1.msra.mxu0 0.0
    %193 = vmatprep.subr.mxu0 0.0
    %194 = vmatpush1.msra.mxu0 0.0
    %195 = vmatprep.subr.mxu0 0.0
    %196 = vmatpush1.msra.mxu0 0.0
    %197 = vmatprep.subr.mxu0 0.0
    %198 = vmatpush1.msra.mxu0 0.0
    %199 = vmatprep.subr.mxu0 0.0
    %200 = vmatpush1.msra.mxu0 0.0
    %201 = vmatprep.subr.mxu0 0.0
    %202 = vmatpush1.msra.mxu0 0.0
    %203 = vmatprep.subr.mxu0 0.0
    %204 = vmatpush1.msra.mxu0 0.0
    %205 = vmatprep.subr.mxu0 0.0
    %206 = vmatpush1.msra.mxu0 0.0
    %207 = vmatprep.subr.mxu0 0.0
    %208 = vmatpush1.msra.mxu0 0.0
    %209 = vmatprep.subr.mxu0 0.0
    %210 = vmatpush1.msra.mxu0 0.0
    %211 = vmatprep.subr.mxu0 0.0
    %212 = vmatpush1.msra.mxu0 0.0
    %213 = vmatprep.subr.mxu0 0.0
    %214 = vmatpush1.msra.mxu0 0.0
    %215 = vmatprep.subr.mxu0 0.0
    %216 = vmatpush1.msra.mxu0 0.0
    %217 = vmatprep.subr.mxu0 0.0
    %218 = vmatpush1.msra.mxu0 0.0
    %219 = vmatprep.subr.mxu0 0.0
    %220 = vmatpush1.msra.mxu0 0.0
    %221 = vmatprep.subr.mxu0 0.0
    %222 = vmatpush1.msra.mxu0 0.0
    %223 = vmatprep.subr.mxu0 0.0
    %224 = vmatpush1.msra.mxu0 0.0
    %225 = vmatprep.subr.mxu0 0.0
    %226 = vmatpush1.msra.mxu0 0.0
    %227 = vmatprep.subr.mxu0 0.0
    %228 = vmatpush1.msra.mxu0 0.0
    %229 = vmatprep.subr.mxu0 0.0
    %230 = vmatpush1.msra.mxu0 0.0
    %231 = vmatprep.subr.mxu0 0.0
    %232 = vmatpush1.msra.mxu0 0.0
    %233 = vmatprep.subr.mxu0 0.0
    %234 = vmatpush1.msra.mxu0 0.0
    %235 = vmatprep.mubr.f32.mxu0 0.0
    %236 = vmatmul.mubr.f32.gmra.mrb[0].mxu0 %v169
    %v237 = vpop.f32.mrb[0].mxu0
    %v238 = vadd.f32 %v166, %v237
    %v239 = vpop.f32.mrb[0].mxu0
    %240 = vdwg.mxu0
    %v243 = vunpack.c.l.s4 1966171168
    %v244 = vunpack.c.0.s8 %v243
    %v245 = vlaneseq
    %v246 = vshrl.u32 %v245, 7
    %v247 = vsub.s32 %v244, %v246
    %v248 = vrot.slane %v238, %v247
    %v249 = vcombine.high %v248, %v248
    %v251 = vunpack.c.l.s4 1966171168
    %v252 = vunpack.c.0.s8 %v251
    %v253 = vlaneseq
    %v254 = vshrl.u32 %v253, 7
    %v255 = vsub.s32 %v252, %v254
    %v256 = vrot.slane %v248, %v255
    %v258 = vunpack.c.l.s4 1966171168
    %v259 = vunpack.c.0.s8 %v258
    %v260 = vlaneseq
    %v261 = vshrl.u32 %v260, 7
    %v262 = vsub.s32 %v259, %v261
    %v263 = vrot.slane %v249, %v262
    %v264 = vlaneseq
    %v265 = vshrl.u32 %v264, 7
    %v266 = vsub.s32 0, %v265
    %v267 = vrot.slane %v256, %v266
    %v268 = vlaneseq
    %v269 = vshrl.u32 %v268, 7
    %v270 = vsub.s32 0, %v269
    %v271 = vrot.slane %v263, %v270
    %v274 = vadd.f32 %v149, %v267
    %v275 = vadd.f32 %v154, %v271
    %v276 = vtanh.pop %v274
    %v277 = vtanh.pop %v275
    %v278 = vld [vmem:[%s7] sm:$0x1]
    %v280 = vlaneseq
    %v281 = vshrl.u32 %v280, 7
    %v282 = vsub.s32 0, %v281
    %v283 = vrot.slane %v278, %v282
    %v285 = vmul.f32 %v276, %v283
    %v286 = vmul.f32 %v277, %v283
    %v287 = vsel %vm75, %v285, 0.0
    %288 = vadd.xlane.f32.xlu0 %v287
    %v289 = vpop.xlane.xlu0 %288
    %v290 = vsel %vm75, %v286, 0.0
    %291 = vadd.xlane.f32.xlu0 %v290
    %v292 = vpop.xlane.xlu0 %291
    %v293 = vld [vmem:[#allocation2] sm:$0x1]
    %v295 = vlaneseq
    %v296 = vshrl.u32 %v295, 7
    %v297 = vsub.s32 0, %v296
    %v298 = vrot.slane %v293, %v297
    %299 = vset.pattern.permute.xlu0 0
    %300 = vperm.xlu0 %299, %v298
    %v301 = vpop.permute.xlu0 %300
    %v303 = vadd.f32 %v289, %v301
    %v304 = vadd.f32 %v292, %v301
    %v307 = vlaneseq
    %v308 = vand.u32 %v307, 127
    %v309 = vlaneseq
    %v310 = vshrl.u32 %v309, 7
    %v311 = vsub.s32 %v308, %v310
    %v312 = vrot.slane %v303, %v311
    %v313 = vlaneseq
    %v314 = vshrl.u32 %v313, 7
    %v315 = vsub.s32 %v308, %v314
    %v316 = vrot.slane %v304, %v315
    %vm317 = vcmask 1041409
    %v318 = vsel %vm317, %v316, %v312
    %vm320 = vcmask 58368
    %v321 = vsel %vm320, %v318, -inf
    %322 = vmax.xlane.f32.xlu0 %v321
    %v323 = vpop.xlane.xlu0 %322
    %v325 = vlaneseq
    %v326 = vshrl.u32 %v325, 7
    %v327 = vsub.s32 0, %v326
    %v328 = vrot.slane %v323, %v327
    %v329 = vlaneseq
    %v330 = vshrl.u32 %v329, 7
    %v331 = vsub.s32 1, %v330
    %v332 = vrot.slane %v323, %v331
    %v335 = vsub.f32 %v303, %v328
    %v336 = vsub.f32 %v304, %v332
    %v337 = vmul.f32 %v335, 1.442695
    %v338 = vpow.pop %v337
    %v339 = vmul.f32 %v336, 1.442695
    %v340 = vpow.pop %v339
    %343 = vset.pattern.permute.xlu0 0
    %344 = vperm.xlu0 %343, %v338
    %v345 = vpop.permute.xlu0 %344
    %346 = vset.pattern.permute.xlu0 0
    %347 = vperm.xlu0 %346, %v340
    %v348 = vpop.permute.xlu0 %347
    %v349 = vlaneseq
    %v350 = vshrl.u32 %v349, 7
    %v351 = vsub.s32 %v308, %v350
    %v352 = vrot.slane %v345, %v351
    %v353 = vlaneseq
    %v354 = vshrl.u32 %v353, 7
    %v355 = vsub.s32 %v308, %v354
    %v356 = vrot.slane %v348, %v355
    %v357 = vsel %vm317, %v356, %v352
    %v359 = vsel %vm320, %v357, 0.0
    %360 = vadd.xlane.f32.xlu0 %v359
    %v361 = vpop.xlane.xlu0 %360
    %v363 = vlaneseq
    %v364 = vshrl.u32 %v363, 7
    %v365 = vsub.s32 0, %v364
    %v366 = vrot.slane %v361, %v365
    %v367 = vlaneseq
    %v368 = vshrl.u32 %v367, 7
    %v369 = vsub.s32 1, %v368
    %v370 = vrot.slane %v361, %v369
    %v373 = vrcp.pop %v366
    %v374 = vmul.f32 %v338, %v373
    %v375 = vrcp.pop %v370
    %v376 = vmul.f32 %v340, %v375
    %378 = vset.pattern.permute.xlu0 0
    %379 = vperm.xlu0 %378, %v374
    %v380 = vpop.permute.xlu0 %379
    %v381 = vlaneseq
    %v382 = vshrl.u32 %v381, 7
    %v383 = vsub.s32 %v308, %v382
    %v384 = vrot.slane %v380, %v383
    %vm385 = vcmask 64512
    %v386 = vsel %vm385, %v384, 0
    %388 = vmatprep.subr.mxu0 0.0
    %389 = vmatpush1.msra.mxu0 %v60
    %390 = vmatprep.subr.mxu0 0.0
    %391 = vmatpush1.msra.mxu0 0.0
    %392 = vmatprep.subr.mxu0 0.0
    %393 = vmatpush1.msra.mxu0 0.0
    %394 = vmatprep.subr.mxu0 0.0
    %395 = vmatpush1.msra.mxu0 0.0
    %396 = vmatprep.subr.mxu0 0.0
    %397 = vmatpush1.msra.mxu0 0.0
    %398 = vmatprep.subr.mxu0 0.0
    %399 = vmatpush1.msra.mxu0 0.0
    %400 = vmatprep.subr.mxu0 0.0
    %401 = vmatpush1.msra.mxu0 0.0
    %402 = vmatprep.subr.mxu0 0.0
    %403 = vmatpush1.msra.mxu0 0.0
    %404 = vmatprep.subr.mxu0 0.0
    %405 = vmatpush1.msra.mxu0 0.0
    %406 = vmatprep.subr.mxu0 0.0
    %407 = vmatpush1.msra.mxu0 0.0
    %408 = vmatprep.subr.mxu0 0.0
    %409 = vmatpush1.msra.mxu0 0.0
    %410 = vmatprep.subr.mxu0 0.0
    %411 = vmatpush1.msra.mxu0 0.0
    %412 = vmatprep.subr.mxu0 0.0
    %413 = vmatpush1.msra.mxu0 0.0
    %414 = vmatprep.subr.mxu0 0.0
    %415 = vmatpush1.msra.mxu0 0.0
    %416 = vmatprep.subr.mxu0 0.0
    %417 = vmatpush1.msra.mxu0 0.0
    %418 = vmatprep.subr.mxu0 0.0
    %419 = vmatpush1.msra.mxu0 0.0
    %420 = vmatprep.subr.mxu0 0.0
    %421 = vmatpush1.msra.mxu0 0.0
    %422 = vmatprep.subr.mxu0 0.0
    %423 = vmatpush1.msra.mxu0 0.0
    %424 = vmatprep.subr.mxu0 0.0
    %425 = vmatpush1.msra.mxu0 0.0
    %426 = vmatprep.subr.mxu0 0.0
    %427 = vmatpush1.msra.mxu0 0.0
    %428 = vmatprep.subr.mxu0 0.0
    %429 = vmatpush1.msra.mxu0 0.0
    %430 = vmatprep.subr.mxu0 0.0
    %431 = vmatpush1.msra.mxu0 0.0
    %432 = vmatprep.subr.mxu0 0.0
    %433 = vmatpush1.msra.mxu0 0.0
    %434 = vmatprep.subr.mxu0 0.0
    %435 = vmatpush1.msra.mxu0 0.0
    %436 = vmatprep.subr.mxu0 0.0
    %437 = vmatpush1.msra.mxu0 0.0
    %438 = vmatprep.subr.mxu0 0.0
    %439 = vmatpush1.msra.mxu0 0.0
    %440 = vmatprep.subr.mxu0 0.0
    %441 = vmatpush1.msra.mxu0 0.0
    %442 = vmatprep.subr.mxu0 0.0
    %443 = vmatpush1.msra.mxu0 0.0
    %444 = vmatprep.subr.mxu0 0.0
    %445 = vmatpush1.msra.mxu0 0.0
    %446 = vmatprep.subr.mxu0 0.0
    %447 = vmatpush1.msra.mxu0 0.0
    %448 = vmatprep.subr.mxu0 0.0
    %449 = vmatpush1.msra.mxu0 0.0
    %450 = vmatprep.subr.mxu0 0.0
    %451 = vmatpush1.msra.mxu0 0.0
    %452 = vmatprep.mubr.f32.mxu0 0.0
    %453 = vmatmul.mubr.f32.gmra.mrb[0].mxu0 %v386
    %v454 = vpop.f32.mrb[0].mxu0
    %v455 = vadd.f32 0.0, %v454
    %v456 = vpop.f32.mrb[0].mxu0
    %457 = vdwg.mxu0
    %459 = vset.pattern.permute.xlu0 0
    %460 = vperm.xlu0 %459, %v376
    %v461 = vpop.permute.xlu0 %460
    %v462 = vlaneseq
    %v463 = vshrl.u32 %v462, 7
    %v464 = vsub.s32 %v308, %v463
    %v465 = vrot.slane %v461, %v464
    %v466 = vsel %vm385, %v465, 0
    %468 = vmatprep.subr.mxu0 0.0
    %469 = vmatpush1.msra.mxu0 %v61
    %470 = vmatprep.subr.mxu0 0.0
    %471 = vmatpush1.msra.mxu0 0.0
    %472 = vmatprep.subr.mxu0 0.0
    %473 = vmatpush1.msra.mxu0 0.0
    %474 = vmatprep.subr.mxu0 0.0
    %475 = vmatpush1.msra.mxu0 0.0
    %476 = vmatprep.subr.mxu0 0.0
    %477 = vmatpush1.msra.mxu0 0.0
    %478 = vmatprep.subr.mxu0 0.0
    %479 = vmatpush1.msra.mxu0 0.0
    %480 = vmatprep.subr.mxu0 0.0
    %481 = vmatpush1.msra.mxu0 0.0
    %482 = vmatprep.subr.mxu0 0.0
    %483 = vmatpush1.msra.mxu0 0.0
    %484 = vmatprep.subr.mxu0 0.0
    %485 = vmatpush1.msra.mxu0 0.0
    %486 = vmatprep.subr.mxu0 0.0
    %487 = vmatpush1.msra.mxu0 0.0
    %488 = vmatprep.subr.mxu0 0.0
    %489 = vmatpush1.msra.mxu0 0.0
    %490 = vmatprep.subr.mxu0 0.0
    %491 = vmatpush1.msra.mxu0 0.0
    %492 = vmatprep.subr.mxu0 0.0
    %493 = vmatpush1.msra.mxu0 0.0
    %494 = vmatprep.subr.mxu0 0.0
    %495 = vmatpush1.msra.mxu0 0.0
    %496 = vmatprep.subr.mxu0 0.0
    %497 = vmatpush1.msra.mxu0 0.0
    %498 = vmatprep.subr.mxu0 0.0
    %499 = vmatpush1.msra.mxu0 0.0
    %500 = vmatprep.subr.mxu0 0.0
    %501 = vmatpush1.msra.mxu0 0.0
    %502 = vmatprep.subr.mxu0 0.0
    %503 = vmatpush1.msra.mxu0 0.0
    %504 = vmatprep.subr.mxu0 0.0
    %505 = vmatpush1.msra.mxu0 0.0
    %506 = vmatprep.subr.mxu0 0.0
    %507 = vmatpush1.msra.mxu0 0.0
    %508 = vmatprep.subr.mxu0 0.0
    %509 = vmatpush1.msra.mxu0 0.0
    %510 = vmatprep.subr.mxu0 0.0
    %511 = vmatpush1.msra.mxu0 0.0
    %512 = vmatprep.subr.mxu0 0.0
    %513 = vmatpush1.msra.mxu0 0.0
    %514 = vmatprep.subr.mxu0 0.0
    %515 = vmatpush1.msra.mxu0 0.0
    %516 = vmatprep.subr.mxu0 0.0
    %517 = vmatpush1.msra.mxu0 0.0
    %518 = vmatprep.subr.mxu0 0.0
    %519 = vmatpush1.msra.mxu0 0.0
    %520 = vmatprep.subr.mxu0 0.0
    %521 = vmatpush1.msra.mxu0 0.0
    %522 = vmatprep.subr.mxu0 0.0
    %523 = vmatpush1.msra.mxu0 0.0
    %524 = vmatprep.subr.mxu0 0.0
    %525 = vmatpush1.msra.mxu0 0.0
    %526 = vmatprep.subr.mxu0 0.0
    %527 = vmatpush1.msra.mxu0 0.0
    %528 = vmatprep.subr.mxu0 0.0
    %529 = vmatpush1.msra.mxu0 0.0
    %530 = vmatprep.subr.mxu0 0.0
    %531 = vmatpush1.msra.mxu0 0.0
    %532 = vmatprep.mubr.f32.mxu0 0.0
    %533 = vmatmul.mubr.f32.gmra.mrb[0].mxu0 %v466
    %v534 = vpop.f32.mrb[0].mxu0
    %v535 = vadd.f32 0.0, %v534
    %v536 = vpop.f32.mrb[0].mxu0
    %537 = vdwg.mxu0
    %v538 = vld [vmem:[%s9] sm:$0xff]
    %v539 = vld [vmem:[%s9 + $0x8] sm:$0xff]
    %v540 = vld [vmem:[%s9 + $0x10] sm:$0xff]
    %v541 = vld [vmem:[%s9 + $0x18] sm:$0xff]
    %v542 = vld [vmem:[%s10] sm:$0xff]
    %v543 = vld [vmem:[%s10 + $0x8] sm:$0xff]
    %v544 = vld [vmem:[%s10 + $0x10] sm:$0xff]
    %v545 = vld [vmem:[%s10 + $0x18] sm:$0xff]
    %v548 = vrot.slane %v535, 7
    %v549 = vsel %vm317, %v548, %v455
    %v550 = vsel %vm75, %v549, 0
    %552 = vmatprep.subr.mxu0 0.0
    %553 = vmatpush1.msra.mxu0 %v542
    %554 = vmatprep.subr.mxu0 0.0
    %555 = vmatpush1.msra.mxu0 %v543
    %556 = vmatprep.subr.mxu0 0.0
    %557 = vmatpush1.msra.mxu0 %v544
    %558 = vmatprep.subr.mxu0 0.0
    %559 = vmatpush1.msra.mxu0 %v545
    %560 = vmatprep.subr.mxu0 0.0
    %561 = vmatpush1.msra.mxu0 0.0
    %562 = vmatprep.subr.mxu0 0.0
    %563 = vmatpush1.msra.mxu0 0.0
    %564 = vmatprep.subr.mxu0 0.0
    %565 = vmatpush1.msra.mxu0 0.0
    %566 = vmatprep.subr.mxu0 0.0
    %567 = vmatpush1.msra.mxu0 0.0
    %568 = vmatprep.subr.mxu0 0.0
    %569 = vmatpush1.msra.mxu0 0.0
    %570 = vmatprep.subr.mxu0 0.0
    %571 = vmatpush1.msra.mxu0 0.0
    %572 = vmatprep.subr.mxu0 0.0
    %573 = vmatpush1.msra.mxu0 0.0
    %574 = vmatprep.subr.mxu0 0.0
    %575 = vmatpush1.msra.mxu0 0.0
    %576 = vmatprep.subr.mxu0 0.0
    %577 = vmatpush1.msra.mxu0 0.0
    %578 = vmatprep.subr.mxu0 0.0
    %579 = vmatpush1.msra.mxu0 0.0
    %580 = vmatprep.subr.mxu0 0.0
    %581 = vmatpush1.msra.mxu0 0.0
    %582 = vmatprep.subr.mxu0 0.0
    %583 = vmatpush1.msra.mxu0 0.0
    %584 = vmatprep.subr.mxu0 0.0
    %585 = vmatpush1.msra.mxu0 0.0
    %586 = vmatprep.subr.mxu0 0.0
    %587 = vmatpush1.msra.mxu0 0.0
    %588 = vmatprep.subr.mxu0 0.0
    %589 = vmatpush1.msra.mxu0 0.0
    %590 = vmatprep.subr.mxu0 0.0
    %591 = vmatpush1.msra.mxu0 0.0
    %592 = vmatprep.subr.mxu0 0.0
    %593 = vmatpush1.msra.mxu0 0.0
    %594 = vmatprep.subr.mxu0 0.0
    %595 = vmatpush1.msra.mxu0 0.0
    %596 = vmatprep.subr.mxu0 0.0
    %597 = vmatpush1.msra.mxu0 0.0
    %598 = vmatprep.subr.mxu0 0.0
    %599 = vmatpush1.msra.mxu0 0.0
    %600 = vmatprep.subr.mxu0 0.0
    %601 = vmatpush1.msra.mxu0 0.0
    %602 = vmatprep.subr.mxu0 0.0
    %603 = vmatpush1.msra.mxu0 0.0
    %604 = vmatprep.subr.mxu0 0.0
    %605 = vmatpush1.msra.mxu0 0.0
    %606 = vmatprep.subr.mxu0 0.0
    %607 = vmatpush1.msra.mxu0 0.0
    %608 = vmatprep.subr.mxu0 0.0
    %609 = vmatpush1.msra.mxu0 0.0
    %610 = vmatprep.subr.mxu0 0.0
    %611 = vmatpush1.msra.mxu0 0.0
    %612 = vmatprep.subr.mxu0 0.0
    %613 = vmatpush1.msra.mxu0 0.0
    %614 = vmatprep.subr.mxu0 0.0
    %615 = vmatpush1.msra.mxu0 0.0
    %616 = vmatprep.mubr.f32.mxu0 0.0
    %617 = vmatmul.mubr.f32.gmra.mrb[0].mxu0 %v550
    %v618 = vpop.f32.mrb[0].mxu0
    %v619 = vadd.f32 0.0, %v618
    %v620 = vpop.f32.mrb[0].mxu0
    %621 = vdwg.mxu0
    %v623 = vsel %vm75, %v63, 0
    %625 = vmatprep.subr.mxu0 0.0
    %626 = vmatpush1.msra.mxu0 %v538
    %627 = vmatprep.subr.mxu0 0.0
    %628 = vmatpush1.msra.mxu0 %v539
    %629 = vmatprep.subr.mxu0 0.0
    %630 = vmatpush1.msra.mxu0 %v540
    %631 = vmatprep.subr.mxu0 0.0
    %632 = vmatpush1.msra.mxu0 %v541
    %633 = vmatprep.subr.mxu0 0.0
    %634 = vmatpush1.msra.mxu0 0.0
    %635 = vmatprep.subr.mxu0 0.0
    %636 = vmatpush1.msra.mxu0 0.0
    %637 = vmatprep.subr.mxu0 0.0
    %638 = vmatpush1.msra.mxu0 0.0
    %639 = vmatprep.subr.mxu0 0.0
    %640 = vmatpush1.msra.mxu0 0.0
    %641 = vmatprep.subr.mxu0 0.0
    %642 = vmatpush1.msra.mxu0 0.0
    %643 = vmatprep.subr.mxu0 0.0
    %644 = vmatpush1.msra.mxu0 0.0
    %645 = vmatprep.subr.mxu0 0.0
    %646 = vmatpush1.msra.mxu0 0.0
    %647 = vmatprep.subr.mxu0 0.0
    %648 = vmatpush1.msra.mxu0 0.0
    %649 = vmatprep.subr.mxu0 0.0
    %650 = vmatpush1.msra.mxu0 0.0
    %651 = vmatprep.subr.mxu0 0.0
    %652 = vmatpush1.msra.mxu0 0.0
    %653 = vmatprep.subr.mxu0 0.0
    %654 = vmatpush1.msra.mxu0 0.0
    %655 = vmatprep.subr.mxu0 0.0
    %656 = vmatpush1.msra.mxu0 0.0
    %657 = vmatprep.subr.mxu0 0.0
    %658 = vmatpush1.msra.mxu0 0.0
    %659 = vmatprep.subr.mxu0 0.0
    %660 = vmatpush1.msra.mxu0 0.0
    %661 = vmatprep.subr.mxu0 0.0
    %662 = vmatpush1.msra.mxu0 0.0
    %663 = vmatprep.subr.mxu0 0.0
    %664 = vmatpush1.msra.mxu0 0.0
    %665 = vmatprep.subr.mxu0 0.0
    %666 = vmatpush1.msra.mxu0 0.0
    %667 = vmatprep.subr.mxu0 0.0
    %668 = vmatpush1.msra.mxu0 0.0
    %669 = vmatprep.subr.mxu0 0.0
    %670 = vmatpush1.msra.mxu0 0.0
    %671 = vmatprep.subr.mxu0 0.0
    %672 = vmatpush1.msra.mxu0 0.0
    %673 = vmatprep.subr.mxu0 0.0
    %674 = vmatpush1.msra.mxu0 0.0
    %675 = vmatprep.subr.mxu0 0.0
    %676 = vmatpush1.msra.mxu0 0.0
    %677 = vmatprep.subr.mxu0 0.0
    %678 = vmatpush1.msra.mxu0 0.0
    %679 = vmatprep.subr.mxu0 0.0
    %680 = vmatpush1.msra.mxu0 0.0
    %681 = vmatprep.subr.mxu0 0.0
    %682 = vmatpush1.msra.mxu0 0.0
    %683 = vmatprep.subr.mxu0 0.0
    %684 = vmatpush1.msra.mxu0 0.0
    %685 = vmatprep.subr.mxu0 0.0
    %686 = vmatpush1.msra.mxu0 0.0
    %687 = vmatprep.subr.mxu0 0.0
    %688 = vmatpush1.msra.mxu0 0.0
    %689 = vmatprep.mubr.f32.mxu0 0.0
    %690 = vmatmul.mubr.f32.gmra.mrb[0].mxu0 %v623
    %v691 = vpop.f32.mrb[0].mxu0
    %v692 = vadd.f32 %v619, %v691
    %v693 = vpop.f32.mrb[0].mxu0
    %694 = vdwg.mxu0
    %v695 = vld [vmem:[%s11] sm:$0x1]
    %v697 = vlaneseq
    %v698 = vshrl.u32 %v697, 7
    %v699 = vsub.s32 0, %v698
    %v700 = vrot.slane %v695, %v699
    %v702 = vadd.f32 %v692, %v700
    %v703 = vld [vmem:[%s12] sm:$0xff]
    %v704 = vld [vmem:[%s12 + $0x8] sm:$0xff]
    %v705 = vld [vmem:[%s12 + $0x10] sm:$0xff]
    %v706 = vld [vmem:[%s12 + $0x18] sm:$0xff]
    %v707 = vld [vmem:[%s13] sm:$0x1]
    %v709 = vlaneseq
    %v710 = vshrl.u32 %v709, 7
    %v711 = vsub.s32 0, %v710
    %v712 = vrot.slane %v707, %v711
    %714 = vmatprep.subr.mxu0 0.0
    %715 = vmatpush1.msra.mxu0 %v703
    %716 = vmatprep.subr.mxu0 0.0
    %717 = vmatpush1.msra.mxu0 %v704
    %718 = vmatprep.subr.mxu0 0.0
    %719 = vmatpush1.msra.mxu0 %v705
    %720 = vmatprep.subr.mxu0 0.0
    %721 = vmatpush1.msra.mxu0 %v706
    %722 = vmatprep.subr.mxu0 0.0
    %723 = vmatpush1.msra.mxu0 0.0
    %724 = vmatprep.subr.mxu0 0.0
    %725 = vmatpush1.msra.mxu0 0.0
    %726 = vmatprep.subr.mxu0 0.0
    %727 = vmatpush1.msra.mxu0 0.0
    %728 = vmatprep.subr.mxu0 0.0
    %729 = vmatpush1.msra.mxu0 0.0
    %730 = vmatprep.subr.mxu0 0.0
    %731 = vmatpush1.msra.mxu0 0.0
    %732 = vmatprep.subr.mxu0 0.0
    %733 = vmatpush1.msra.mxu0 0.0
    %734 = vmatprep.subr.mxu0 0.0
    %735 = vmatpush1.msra.mxu0 0.0
    %736 = vmatprep.subr.mxu0 0.0
    %737 = vmatpush1.msra.mxu0 0.0
    %738 = vmatprep.subr.mxu0 0.0
    %739 = vmatpush1.msra.mxu0 0.0
    %740 = vmatprep.subr.mxu0 0.0
    %741 = vmatpush1.msra.mxu0 0.0
    %742 = vmatprep.subr.mxu0 0.0
    %743 = vmatpush1.msra.mxu0 0.0
    %744 = vmatprep.subr.mxu0 0.0
    %745 = vmatpush1.msra.mxu0 0.0
    %746 = vmatprep.subr.mxu0 0.0
    %747 = vmatpush1.msra.mxu0 0.0
    %748 = vmatprep.subr.mxu0 0.0
    %749 = vmatpush1.msra.mxu0 0.0
    %750 = vmatprep.subr.mxu0 0.0
    %751 = vmatpush1.msra.mxu0 0.0
    %752 = vmatprep.subr.mxu0 0.0
    %753 = vmatpush1.msra.mxu0 0.0
    %754 = vmatprep.subr.mxu0 0.0
    %755 = vmatpush1.msra.mxu0 0.0
    %756 = vmatprep.subr.mxu0 0.0
    %757 = vmatpush1.msra.mxu0 0.0
    %758 = vmatprep.subr.mxu0 0.0
    %759 = vmatpush1.msra.mxu0 0.0
    %760 = vmatprep.subr.mxu0 0.0
    %761 = vmatpush1.msra.mxu0 0.0
    %762 = vmatprep.subr.mxu0 0.0
    %763 = vmatpush1.msra.mxu0 0.0
    %764 = vmatprep.subr.mxu0 0.0
    %765 = vmatpush1.msra.mxu0 0.0
    %766 = vmatprep.subr.mxu0 0.0
    %767 = vmatpush1.msra.mxu0 0.0
    %768 = vmatprep.subr.mxu0 0.0
    %769 = vmatpush1.msra.mxu0 0.0
    %770 = vmatprep.subr.mxu0 0.0
    %771 = vmatpush1.msra.mxu0 0.0
    %772 = vmatprep.subr.mxu0 0.0
    %773 = vmatpush1.msra.mxu0 0.0
    %774 = vmatprep.subr.mxu0 0.0
    %775 = vmatpush1.msra.mxu0 0.0
    %776 = vmatprep.subr.mxu0 0.0
    %777 = vmatpush1.msra.mxu0 0.0
    %778 = vmatprep.mubr.f32.mxu0 0.0
    %779 = vmatmul.mubr.f32.gmra.mrb[0].mxu0 %v169
    %v780 = vpop.f32.mrb[0].mxu0
    %v781 = vadd.f32 %v712, %v780
    %v782 = vpop.f32.mrb[0].mxu0
    %783 = vdwg.mxu0
    %v784 = vadd.f32 %v702, %v781
    %v785 = vxor.u32 %v784, 2147483648
    %v786 = vmul.f32 %v785, 1.442695
    %v787 = vpow.pop %v786
    %v788 = vadd.f32 %v787, 1.0
    %v789 = vrcp.pop %v788
    %v790 = vmul.f32 1.0, %v789
    %s791 = scalar_lea.vmem %s9, 32
    %v792 = vld [vmem:[%s791] sm:$0xff]
    %v793 = vld [vmem:[%s791 + $0x8] sm:$0xff]
    %v794 = vld [vmem:[%s791 + $0x10] sm:$0xff]
    %v795 = vld [vmem:[%s791 + $0x18] sm:$0xff]
    %s796 = scalar_lea.vmem %s10, 32
    %v797 = vld [vmem:[%s796] sm:$0xff]
    %v798 = vld [vmem:[%s796 + $0x8] sm:$0xff]
    %v799 = vld [vmem:[%s796 + $0x10] sm:$0xff]
    %v800 = vld [vmem:[%s796 + $0x18] sm:$0xff]
    %801 = vmatprep.subr.mxu0 0.0
    %802 = vmatpush1.msra.mxu0 %v797
    %803 = vmatprep.subr.mxu0 0.0
    %804 = vmatpush1.msra.mxu0 %v798
    %805 = vmatprep.subr.mxu0 0.0
    %806 = vmatpush1.msra.mxu0 %v799
    %807 = vmatprep.subr.mxu0 0.0
    %808 = vmatpush1.msra.mxu0 %v800
    %809 = vmatprep.subr.mxu0 0.0
    %810 = vmatpush1.msra.mxu0 0.0
    %811 = vmatprep.subr.mxu0 0.0
    %812 = vmatpush1.msra.mxu0 0.0
    %813 = vmatprep.subr.mxu0 0.0
    %814 = vmatpush1.msra.mxu0 0.0
    %815 = vmatprep.subr.mxu0 0.0
    %816 = vmatpush1.msra.mxu0 0.0
    %817 = vmatprep.subr.mxu0 0.0
    %818 = vmatpush1.msra.mxu0 0.0
    %819 = vmatprep.subr.mxu0 0.0
    %820 = vmatpush1.msra.mxu0 0.0
    %821 = vmatprep.subr.mxu0 0.0
    %822 = vmatpush1.msra.mxu0 0.0
    %823 = vmatprep.subr.mxu0 0.0
    %824 = vmatpush1.msra.mxu0 0.0
    %825 = vmatprep.subr.mxu0 0.0
    %826 = vmatpush1.msra.mxu0 0.0
    %827 = vmatprep.subr.mxu0 0.0
    %828 = vmatpush1.msra.mxu0 0.0
    %829 = vmatprep.subr.mxu0 0.0
    %830 = vmatpush1.msra.mxu0 0.0
    %831 = vmatprep.subr.mxu0 0.0
    %832 = vmatpush1.msra.mxu0 0.0
    %833 = vmatprep.subr.mxu0 0.0
    %834 = vmatpush1.msra.mxu0 0.0
    %835 = vmatprep.subr.mxu0 0.0
    %836 = vmatpush1.msra.mxu0 0.0
    %837 = vmatprep.subr.mxu0 0.0
    %838 = vmatpush1.msra.mxu0 0.0
    %839 = vmatprep.subr.mxu0 0.0
    %840 = vmatpush1.msra.mxu0 0.0
    %841 = vmatprep.subr.mxu0 0.0
    %842 = vmatpush1.msra.mxu0 0.0
    %843 = vmatprep.subr.mxu0 0.0
    %844 = vmatpush1.msra.mxu0 0.0
    %845 = vmatprep.subr.mxu0 0.0
    %846 = vmatpush1.msra.mxu0 0.0
    %847 = vmatprep.subr.mxu0 0.0
    %848 = vmatpush1.msra.mxu0 0.0
    %849 = vmatprep.subr.mxu0 0.0
    %850 = vmatpush1.msra.mxu0 0.0
    %851 = vmatprep.subr.mxu0 0.0
    %852 = vmatpush1.msra.mxu0 0.0
    %853 = vmatprep.subr.mxu0 0.0
    %854 = vmatpush1.msra.mxu0 0.0
    %855 = vmatprep.subr.mxu0 0.0
    %856 = vmatpush1.msra.mxu0 0.0
    %857 = vmatprep.subr.mxu0 0.0
    %858 = vmatpush1.msra.mxu0 0.0
    %859 = vmatprep.subr.mxu0 0.0
    %860 = vmatpush1.msra.mxu0 0.0
    %861 = vmatprep.subr.mxu0 0.0
    %862 = vmatpush1.msra.mxu0 0.0
    %863 = vmatprep.subr.mxu0 0.0
    %864 = vmatpush1.msra.mxu0 0.0
    %865 = vmatprep.mubr.f32.mxu0 0.0
    %866 = vmatmul.mubr.f32.gmra.mrb[0].mxu0 %v550
    %v867 = vpop.f32.mrb[0].mxu0
    %v868 = vadd.f32 0.0, %v867
    %v869 = vpop.f32.mrb[0].mxu0
    %870 = vdwg.mxu0
    %871 = vmatprep.subr.mxu0 0.0
    %872 = vmatpush1.msra.mxu0 %v792
    %873 = vmatprep.subr.mxu0 0.0
    %874 = vmatpush1.msra.mxu0 %v793
    %875 = vmatprep.subr.mxu0 0.0
    %876 = vmatpush1.msra.mxu0 %v794
    %877 = vmatprep.subr.mxu0 0.0
    %878 = vmatpush1.msra.mxu0 %v795
    %879 = vmatprep.subr.mxu0 0.0
    %880 = vmatpush1.msra.mxu0 0.0
    %881 = vmatprep.subr.mxu0 0.0
    %882 = vmatpush1.msra.mxu0 0.0
    %883 = vmatprep.subr.mxu0 0.0
    %884 = vmatpush1.msra.mxu0 0.0
    %885 = vmatprep.subr.mxu0 0.0
    %886 = vmatpush1.msra.mxu0 0.0
    %887 = vmatprep.subr.mxu0 0.0
    %888 = vmatpush1.msra.mxu0 0.0
    %889 = vmatprep.subr.mxu0 0.0
    %890 = vmatpush1.msra.mxu0 0.0
    %891 = vmatprep.subr.mxu0 0.0
    %892 = vmatpush1.msra.mxu0 0.0
    %893 = vmatprep.subr.mxu0 0.0
    %894 = vmatpush1.msra.mxu0 0.0
    %895 = vmatprep.subr.mxu0 0.0
    %896 = vmatpush1.msra.mxu0 0.0
    %897 = vmatprep.subr.mxu0 0.0
    %898 = vmatpush1.msra.mxu0 0.0
    %899 = vmatprep.subr.mxu0 0.0
    %900 = vmatpush1.msra.mxu0 0.0
    %901 = vmatprep.subr.mxu0 0.0
    %902 = vmatpush1.msra.mxu0 0.0
    %903 = vmatprep.subr.mxu0 0.0
    %904 = vmatpush1.msra.mxu0 0.0
    %905 = vmatprep.subr.mxu0 0.0
    %906 = vmatpush1.msra.mxu0 0.0
    %907 = vmatprep.subr.mxu0 0.0
    %908 = vmatpush1.msra.mxu0 0.0
    %909 = vmatprep.subr.mxu0 0.0
    %910 = vmatpush1.msra.mxu0 0.0
    %911 = vmatprep.subr.mxu0 0.0
    %912 = vmatpush1.msra.mxu0 0.0
    %913 = vmatprep.subr.mxu0 0.0
    %914 = vmatpush1.msra.mxu0 0.0
    %915 = vmatprep.subr.mxu0 0.0
    %916 = vmatpush1.msra.mxu0 0.0
    %917 = vmatprep.subr.mxu0 0.0
    %918 = vmatpush1.msra.mxu0 0.0
    %919 = vmatprep.subr.mxu0 0.0
    %920 = vmatpush1.msra.mxu0 0.0
    %921 = vmatprep.subr.mxu0 0.0
    %922 = vmatpush1.msra.mxu0 0.0
    %923 = vmatprep.subr.mxu0 0.0
    %924 = vmatpush1.msra.mxu0 0.0
    %925 = vmatprep.subr.mxu0 0.0
    %926 = vmatpush1.msra.mxu0 0.0
    %927 = vmatprep.subr.mxu0 0.0
    %928 = vmatpush1.msra.mxu0 0.0
    %929 = vmatprep.subr.mxu0 0.0
    %930 = vmatpush1.msra.mxu0 0.0
    %931 = vmatprep.subr.mxu0 0.0
    %932 = vmatpush1.msra.mxu0 0.0
    %933 = vmatprep.subr.mxu0 0.0
    %934 = vmatpush1.msra.mxu0 0.0
    %935 = vmatprep.mubr.f32.mxu0 0.0
    %936 = vmatmul.mubr.f32.gmra.mrb[0].mxu0 %v623
    %v937 = vpop.f32.mrb[0].mxu0
    %v938 = vadd.f32 %v868, %v937
    %v939 = vpop.f32.mrb[0].mxu0
    %940 = vdwg.mxu0
    %s941 = scalar_lea.vmem %s11, 1
    %v942 = vld [vmem:[%s941] sm:$0x1]
    %v944 = vlaneseq
    %v945 = vshrl.u32 %v944, 7
    %v946 = vsub.s32 0, %v945
    %v947 = vrot.slane %v942, %v946
    %v949 = vadd.f32 %v938, %v947
    %s950 = scalar_lea.vmem %s12, 32
    %v951 = vld [vmem:[%s950] sm:$0xff]
    %v952 = vld [vmem:[%s950 + $0x8] sm:$0xff]
    %v953 = vld [vmem:[%s950 + $0x10] sm:$0xff]
    %v954 = vld [vmem:[%s950 + $0x18] sm:$0xff]
    %s955 = scalar_lea.vmem %s13, 1
    %v956 = vld [vmem:[%s955] sm:$0x1]
    %v958 = vlaneseq
    %v959 = vshrl.u32 %v958, 7
    %v960 = vsub.s32 0, %v959
    %v961 = vrot.slane %v956, %v960
    %963 = vmatprep.subr.mxu0 0.0
    %964 = vmatpush1.msra.mxu0 %v951
    %965 = vmatprep.subr.mxu0 0.0
    %966 = vmatpush1.msra.mxu0 %v952
    %967 = vmatprep.subr.mxu0 0.0
    %968 = vmatpush1.msra.mxu0 %v953
    %969 = vmatprep.subr.mxu0 0.0
    %970 = vmatpush1.msra.mxu0 %v954
    %971 = vmatprep.subr.mxu0 0.0
    %972 = vmatpush1.msra.mxu0 0.0
    %973 = vmatprep.subr.mxu0 0.0
    %974 = vmatpush1.msra.mxu0 0.0
    %975 = vmatprep.subr.mxu0 0.0
    %976 = vmatpush1.msra.mxu0 0.0
    %977 = vmatprep.subr.mxu0 0.0
    %978 = vmatpush1.msra.mxu0 0.0
    %979 = vmatprep.subr.mxu0 0.0
    %980 = vmatpush1.msra.mxu0 0.0
    %981 = vmatprep.subr.mxu0 0.0
    %982 = vmatpush1.msra.mxu0 0.0
    %983 = vmatprep.subr.mxu0 0.0
    %984 = vmatpush1.msra.mxu0 0.0
    %985 = vmatprep.subr.mxu0 0.0
    %986 = vmatpush1.msra.mxu0 0.0
    %987 = vmatprep.subr.mxu0 0.0
    %988 = vmatpush1.msra.mxu0 0.0
    %989 = vmatprep.subr.mxu0 0.0
    %990 = vmatpush1.msra.mxu0 0.0
    %991 = vmatprep.subr.mxu0 0.0
    %992 = vmatpush1.msra.mxu0 0.0
    %993 = vmatprep.subr.mxu0 0.0
    %994 = vmatpush1.msra.mxu0 0.0
    %995 = vmatprep.subr.mxu0 0.0
    %996 = vmatpush1.msra.mxu0 0.0
    %997 = vmatprep.subr.mxu0 0.0
    %998 = vmatpush1.msra.mxu0 0.0
    %999 = vmatprep.subr.mxu0 0.0
    %1000 = vmatpush1.msra.mxu0 0.0
    %1001 = vmatprep.subr.mxu0 0.0
    %1002 = vmatpush1.msra.mxu0 0.0
    %1003 = vmatprep.subr.mxu0 0.0
    %1004 = vmatpush1.msra.mxu0 0.0
    %1005 = vmatprep.subr.mxu0 0.0
    %1006 = vmatpush1.msra.mxu0 0.0
    %1007 = vmatprep.subr.mxu0 0.0
    %1008 = vmatpush1.msra.mxu0 0.0
    %1009 = vmatprep.subr.mxu0 0.0
    %1010 = vmatpush1.msra.mxu0 0.0
    %1011 = vmatprep.subr.mxu0 0.0
    %1012 = vmatpush1.msra.mxu0 0.0
    %1013 = vmatprep.subr.mxu0 0.0
    %1014 = vmatpush1.msra.mxu0 0.0
    %1015 = vmatprep.subr.mxu0 0.0
    %1016 = vmatpush1.msra.mxu0 0.0
    %1017 = vmatprep.subr.mxu0 0.0
    %1018 = vmatpush1.msra.mxu0 0.0
    %1019 = vmatprep.subr.mxu0 0.0
    %1020 = vmatpush1.msra.mxu0 0.0
    %1021 = vmatprep.subr.mxu0 0.0
    %1022 = vmatpush1.msra.mxu0 0.0
    %1023 = vmatprep.subr.mxu0 0.0
    %1024 = vmatpush1.msra.mxu0 0.0
    %1025 = vmatprep.subr.mxu0 0.0
    %1026 = vmatpush1.msra.mxu0 0.0
    %1027 = vmatprep.mubr.f32.mxu0 0.0
    %1028 = vmatmul.mubr.f32.gmra.mrb[0].mxu0 %v169
    %v1029 = vpop.f32.mrb[0].mxu0
    %v1030 = vadd.f32 %v961, %v1029
    %v1031 = vpop.f32.mrb[0].mxu0
    %1032 = vdwg.mxu0
    %v1033 = vadd.f32 %v949, %v1030
    %v1034 = vxor.u32 %v1033, 2147483648
    %v1035 = vmul.f32 %v1034, 1.442695
    %v1036 = vpow.pop %v1035
    %v1037 = vadd.f32 %v1036, 1.0
    %v1038 = vrcp.pop %v1037
    %v1039 = vmul.f32 1.0, %v1038
    %s1040 = scalar_lea.vmem %s9, 64
    %v1041 = vld [vmem:[%s1040] sm:$0xff]
    %v1042 = vld [vmem:[%s1040 + $0x8] sm:$0xff]
    %v1043 = vld [vmem:[%s1040 + $0x10] sm:$0xff]
    %v1044 = vld [vmem:[%s1040 + $0x18] sm:$0xff]
    %s1045 = scalar_lea.vmem %s10, 64
    %v1046 = vld [vmem:[%s1045] sm:$0xff]
    %v1047 = vld [vmem:[%s1045 + $0x8] sm:$0xff]
    %v1048 = vld [vmem:[%s1045 + $0x10] sm:$0xff]
    %v1049 = vld [vmem:[%s1045 + $0x18] sm:$0xff]
    %1050 = vmatprep.subr.mxu0 0.0
    %1051 = vmatpush1.msra.mxu0 %v1046
    %1052 = vmatprep.subr.mxu0 0.0
    %1053 = vmatpush1.msra.mxu0 %v1047
    %1054 = vmatprep.subr.mxu0 0.0
    %1055 = vmatpush1.msra.mxu0 %v1048
    %1056 = vmatprep.subr.mxu0 0.0
    %1057 = vmatpush1.msra.mxu0 %v1049
    %1058 = vmatprep.subr.mxu0 0.0
    %1059 = vmatpush1.msra.mxu0 0.0
    %1060 = vmatprep.subr.mxu0 0.0
    %1061 = vmatpush1.msra.mxu0 0.0
    %1062 = vmatprep.subr.mxu0 0.0
    %1063 = vmatpush1.msra.mxu0 0.0
    %1064 = vmatprep.subr.mxu0 0.0
    %1065 = vmatpush1.msra.mxu0 0.0
    %1066 = vmatprep.subr.mxu0 0.0
    %1067 = vmatpush1.msra.mxu0 0.0
    %1068 = vmatprep.subr.mxu0 0.0
    %1069 = vmatpush1.msra.mxu0 0.0
    %1070 = vmatprep.subr.mxu0 0.0
    %1071 = vmatpush1.msra.mxu0 0.0
    %1072 = vmatprep.subr.mxu0 0.0
    %1073 = vmatpush1.msra.mxu0 0.0
    %1074 = vmatprep.subr.mxu0 0.0
    %1075 = vmatpush1.msra.mxu0 0.0
    %1076 = vmatprep.subr.mxu0 0.0
    %1077 = vmatpush1.msra.mxu0 0.0
    %1078 = vmatprep.subr.mxu0 0.0
    %1079 = vmatpush1.msra.mxu0 0.0
    %1080 = vmatprep.subr.mxu0 0.0
    %1081 = vmatpush1.msra.mxu0 0.0
    %1082 = vmatprep.subr.mxu0 0.0
    %1083 = vmatpush1.msra.mxu0 0.0
    %1084 = vmatprep.subr.mxu0 0.0
    %1085 = vmatpush1.msra.mxu0 0.0
    %1086 = vmatprep.subr.mxu0 0.0
    %1087 = vmatpush1.msra.mxu0 0.0
    %1088 = vmatprep.subr.mxu0 0.0
    %1089 = vmatpush1.msra.mxu0 0.0
    %1090 = vmatprep.subr.mxu0 0.0
    %1091 = vmatpush1.msra.mxu0 0.0
    %1092 = vmatprep.subr.mxu0 0.0
    %1093 = vmatpush1.msra.mxu0 0.0
    %1094 = vmatprep.subr.mxu0 0.0
    %1095 = vmatpush1.msra.mxu0 0.0
    %1096 = vmatprep.subr.mxu0 0.0
    %1097 = vmatpush1.msra.mxu0 0.0
    %1098 = vmatprep.subr.mxu0 0.0
    %1099 = vmatpush1.msra.mxu0 0.0
    %1100 = vmatprep.subr.mxu0 0.0
    %1101 = vmatpush1.msra.mxu0 0.0
    %1102 = vmatprep.subr.mxu0 0.0
    %1103 = vmatpush1.msra.mxu0 0.0
    %1104 = vmatprep.subr.mxu0 0.0
    %1105 = vmatpush1.msra.mxu0 0.0
    %1106 = vmatprep.subr.mxu0 0.0
    %1107 = vmatpush1.msra.mxu0 0.0
    %1108 = vmatprep.subr.mxu0 0.0
    %1109 = vmatpush1.msra.mxu0 0.0
    %1110 = vmatprep.subr.mxu0 0.0
    %1111 = vmatpush1.msra.mxu0 0.0
    %1112 = vmatprep.subr.mxu0 0.0
    %1113 = vmatpush1.msra.mxu0 0.0
    %1114 = vmatprep.mubr.f32.mxu0 0.0
    %1115 = vmatmul.mubr.f32.gmra.mrb[0].mxu0 %v550
    %v1116 = vpop.f32.mrb[0].mxu0
    %v1117 = vadd.f32 0.0, %v1116
    %v1118 = vpop.f32.mrb[0].mxu0
    %1119 = vdwg.mxu0
    %1120 = vmatprep.subr.mxu0 0.0
    %1121 = vmatpush1.msra.mxu0 %v1041
    %1122 = vmatprep.subr.mxu0 0.0
    %1123 = vmatpush1.msra.mxu0 %v1042
    %1124 = vmatprep.subr.mxu0 0.0
    %1125 = vmatpush1.msra.mxu0 %v1043
    %1126 = vmatprep.subr.mxu0 0.0
    %1127 = vmatpush1.msra.mxu0 %v1044
    %1128 = vmatprep.subr.mxu0 0.0
    %1129 = vmatpush1.msra.mxu0 0.0
    %1130 = vmatprep.subr.mxu0 0.0
    %1131 = vmatpush1.msra.mxu0 0.0
    %1132 = vmatprep.subr.mxu0 0.0
    %1133 = vmatpush1.msra.mxu0 0.0
    %1134 = vmatprep.subr.mxu0 0.0
    %1135 = vmatpush1.msra.mxu0 0.0
    %1136 = vmatprep.subr.mxu0 0.0
    %1137 = vmatpush1.msra.mxu0 0.0
    %1138 = vmatprep.subr.mxu0 0.0
    %1139 = vmatpush1.msra.mxu0 0.0
    %1140 = vmatprep.subr.mxu0 0.0
    %1141 = vmatpush1.msra.mxu0 0.0
    %1142 = vmatprep.subr.mxu0 0.0
    %1143 = vmatpush1.msra.mxu0 0.0
    %1144 = vmatprep.subr.mxu0 0.0
    %1145 = vmatpush1.msra.mxu0 0.0
    %1146 = vmatprep.subr.mxu0 0.0
    %1147 = vmatpush1.msra.mxu0 0.0
    %1148 = vmatprep.subr.mxu0 0.0
    %1149 = vmatpush1.msra.mxu0 0.0
    %1150 = vmatprep.subr.mxu0 0.0
    %1151 = vmatpush1.msra.mxu0 0.0
    %1152 = vmatprep.subr.mxu0 0.0
    %1153 = vmatpush1.msra.mxu0 0.0
    %1154 = vmatprep.subr.mxu0 0.0
    %1155 = vmatpush1.msra.mxu0 0.0
    %1156 = vmatprep.subr.mxu0 0.0
    %1157 = vmatpush1.msra.mxu0 0.0
    %1158 = vmatprep.subr.mxu0 0.0
    %1159 = vmatpush1.msra.mxu0 0.0
    %1160 = vmatprep.subr.mxu0 0.0
    %1161 = vmatpush1.msra.mxu0 0.0
    %1162 = vmatprep.subr.mxu0 0.0
    %1163 = vmatpush1.msra.mxu0 0.0
    %1164 = vmatprep.subr.mxu0 0.0
    %1165 = vmatpush1.msra.mxu0 0.0
    %1166 = vmatprep.subr.mxu0 0.0
    %1167 = vmatpush1.msra.mxu0 0.0
    %1168 = vmatprep.subr.mxu0 0.0
    %1169 = vmatpush1.msra.mxu0 0.0
    %1170 = vmatprep.subr.mxu0 0.0
    %1171 = vmatpush1.msra.mxu0 0.0
    %1172 = vmatprep.subr.mxu0 0.0
    %1173 = vmatpush1.msra.mxu0 0.0
    %1174 = vmatprep.subr.mxu0 0.0
    %1175 = vmatpush1.msra.mxu0 0.0
    %1176 = vmatprep.subr.mxu0 0.0
    %1177 = vmatpush1.msra.mxu0 0.0
    %1178 = vmatprep.subr.mxu0 0.0
    %1179 = vmatpush1.msra.mxu0 0.0
    %1180 = vmatprep.subr.mxu0 0.0
    %1181 = vmatpush1.msra.mxu0 0.0
    %1182 = vmatprep.subr.mxu0 0.0
    %1183 = vmatpush1.msra.mxu0 0.0
    %1184 = vmatprep.mubr.f32.mxu0 0.0
    %1185 = vmatmul.mubr.f32.gmra.mrb[0].mxu0 %v623
    %v1186 = vpop.f32.mrb[0].mxu0
    %v1187 = vadd.f32 %v1117, %v1186
    %v1188 = vpop.f32.mrb[0].mxu0
    %1189 = vdwg.mxu0
    %s1190 = scalar_lea.vmem %s11, 2
    %v1191 = vld [vmem:[%s1190] sm:$0x1]
    %v1193 = vlaneseq
    %v1194 = vshrl.u32 %v1193, 7
    %v1195 = vsub.s32 0, %v1194
    %v1196 = vrot.slane %v1191, %v1195
    %v1198 = vadd.f32 %v1187, %v1196
    %s1199 = scalar_lea.vmem %s12, 64
    %v1200 = vld [vmem:[%s1199] sm:$0xff]
    %v1201 = vld [vmem:[%s1199 + $0x8] sm:$0xff]
    %v1202 = vld [vmem:[%s1199 + $0x10] sm:$0xff]
    %v1203 = vld [vmem:[%s1199 + $0x18] sm:$0xff]
    %s1204 = scalar_lea.vmem %s13, 2
    %v1205 = vld [vmem:[%s1204] sm:$0x1]
    %v1207 = vlaneseq
    %v1208 = vshrl.u32 %v1207, 7
    %v1209 = vsub.s32 0, %v1208
    %v1210 = vrot.slane %v1205, %v1209
    %1212 = vmatprep.subr.mxu0 0.0
    %1213 = vmatpush1.msra.mxu0 %v1200
    %1214 = vmatprep.subr.mxu0 0.0
    %1215 = vmatpush1.msra.mxu0 %v1201
    %1216 = vmatprep.subr.mxu0 0.0
    %1217 = vmatpush1.msra.mxu0 %v1202
    %1218 = vmatprep.subr.mxu0 0.0
    %1219 = vmatpush1.msra.mxu0 %v1203
    %1220 = vmatprep.subr.mxu0 0.0
    %1221 = vmatpush1.msra.mxu0 0.0
    %1222 = vmatprep.subr.mxu0 0.0
    %1223 = vmatpush1.msra.mxu0 0.0
    %1224 = vmatprep.subr.mxu0 0.0
    %1225 = vmatpush1.msra.mxu0 0.0
    %1226 = vmatprep.subr.mxu0 0.0
    %1227 = vmatpush1.msra.mxu0 0.0
    %1228 = vmatprep.subr.mxu0 0.0
    %1229 = vmatpush1.msra.mxu0 0.0
    %1230 = vmatprep.subr.mxu0 0.0
    %1231 = vmatpush1.msra.mxu0 0.0
    %1232 = vmatprep.subr.mxu0 0.0
    %1233 = vmatpush1.msra.mxu0 0.0
    %1234 = vmatprep.subr.mxu0 0.0
    %1235 = vmatpush1.msra.mxu0 0.0
    %1236 = vmatprep.subr.mxu0 0.0
    %1237 = vmatpush1.msra.mxu0 0.0
    %1238 = vmatprep.subr.mxu0 0.0
    %1239 = vmatpush1.msra.mxu0 0.0
    %1240 = vmatprep.subr.mxu0 0.0
    %1241 = vmatpush1.msra.mxu0 0.0
    %1242 = vmatprep.subr.mxu0 0.0
    %1243 = vmatpush1.msra.mxu0 0.0
    %1244 = vmatprep.subr.mxu0 0.0
    %1245 = vmatpush1.msra.mxu0 0.0
    %1246 = vmatprep.subr.mxu0 0.0
    %1247 = vmatpush1.msra.mxu0 0.0
    %1248 = vmatprep.subr.mxu0 0.0
    %1249 = vmatpush1.msra.mxu0 0.0
    %1250 = vmatprep.subr.mxu0 0.0
    %1251 = vmatpush1.msra.mxu0 0.0
    %1252 = vmatprep.subr.mxu0 0.0
    %1253 = vmatpush1.msra.mxu0 0.0
    %1254 = vmatprep.subr.mxu0 0.0
    %1255 = vmatpush1.msra.mxu0 0.0
    %1256 = vmatprep.subr.mxu0 0.0
    %1257 = vmatpush1.msra.mxu0 0.0
    %1258 = vmatprep.subr.mxu0 0.0
    %1259 = vmatpush1.msra.mxu0 0.0
    %1260 = vmatprep.subr.mxu0 0.0
    %1261 = vmatpush1.msra.mxu0 0.0
    %1262 = vmatprep.subr.mxu0 0.0
    %1263 = vmatpush1.msra.mxu0 0.0
    %1264 = vmatprep.subr.mxu0 0.0
    %1265 = vmatpush1.msra.mxu0 0.0
    %1266 = vmatprep.subr.mxu0 0.0
    %1267 = vmatpush1.msra.mxu0 0.0
    %1268 = vmatprep.subr.mxu0 0.0
    %1269 = vmatpush1.msra.mxu0 0.0
    %1270 = vmatprep.subr.mxu0 0.0
    %1271 = vmatpush1.msra.mxu0 0.0
    %1272 = vmatprep.subr.mxu0 0.0
    %1273 = vmatpush1.msra.mxu0 0.0
    %1274 = vmatprep.subr.mxu0 0.0
    %1275 = vmatpush1.msra.mxu0 0.0
    %1276 = vmatprep.mubr.f32.mxu0 0.0
    %1277 = vmatmul.mubr.f32.gmra.mrb[0].mxu0 %v169
    %v1278 = vpop.f32.mrb[0].mxu0
    %v1279 = vadd.f32 %v1210, %v1278
    %v1280 = vpop.f32.mrb[0].mxu0
    %1281 = vdwg.mxu0
    %v1282 = vmul.f32 %v790, %v1279
    %v1283 = vadd.f32 %v1198, %v1282
    %v1284 = vtanh.pop %v1283
    %v1285 = vsub.f32 1.0, %v1039
    %v1286 = vmul.f32 %v1285, %v1284
    %v1287 = vmul.f32 %v1039, %v62
    %v1288 = vadd.f32 %v1286, %v1287
    %v1289 = vld [vmem:[%s14] sm:$0xff]
    %v1290 = vld [vmem:[%s14 + $0x8] sm:$0xff]
    %v1291 = vld [vmem:[%s14 + $0x10] sm:$0xff]
    %v1292 = vld [vmem:[%s14 + $0x18] sm:$0xff]
    %v1293 = vld [vmem:[%s15] sm:$0x1]
    %v1295 = vlaneseq
    %v1296 = vshrl.u32 %v1295, 7
    %v1297 = vsub.s32 0, %v1296
    %v1298 = vrot.slane %v1293, %v1297
    %v1301 = vsel %vm75, %v1288, 0
    %1303 = vmatprep.subr.mxu0 0.0
    %1304 = vmatpush1.msra.mxu0 %v1289
    %1305 = vmatprep.subr.mxu0 0.0
    %1306 = vmatpush1.msra.mxu0 %v1290
    %1307 = vmatprep.subr.mxu0 0.0
    %1308 = vmatpush1.msra.mxu0 %v1291
    %1309 = vmatprep.subr.mxu0 0.0
    %1310 = vmatpush1.msra.mxu0 %v1292
    %1311 = vmatprep.subr.mxu0 0.0
    %1312 = vmatpush1.msra.mxu0 0.0
    %1313 = vmatprep.subr.mxu0 0.0
    %1314 = vmatpush1.msra.mxu0 0.0
    %1315 = vmatprep.subr.mxu0 0.0
    %1316 = vmatpush1.msra.mxu0 0.0
    %1317 = vmatprep.subr.mxu0 0.0
    %1318 = vmatpush1.msra.mxu0 0.0
    %1319 = vmatprep.subr.mxu0 0.0
    %1320 = vmatpush1.msra.mxu0 0.0
    %1321 = vmatprep.subr.mxu0 0.0
    %1322 = vmatpush1.msra.mxu0 0.0
    %1323 = vmatprep.subr.mxu0 0.0
    %1324 = vmatpush1.msra.mxu0 0.0
    %1325 = vmatprep.subr.mxu0 0.0
    %1326 = vmatpush1.msra.mxu0 0.0
    %1327 = vmatprep.subr.mxu0 0.0
    %1328 = vmatpush1.msra.mxu0 0.0
    %1329 = vmatprep.subr.mxu0 0.0
    %1330 = vmatpush1.msra.mxu0 0.0
    %1331 = vmatprep.subr.mxu0 0.0
    %1332 = vmatpush1.msra.mxu0 0.0
    %1333 = vmatprep.subr.mxu0 0.0
    %1334 = vmatpush1.msra.mxu0 0.0
    %1335 = vmatprep.subr.mxu0 0.0
    %1336 = vmatpush1.msra.mxu0 0.0
    %1337 = vmatprep.subr.mxu0 0.0
    %1338 = vmatpush1.msra.mxu0 0.0
    %1339 = vmatprep.subr.mxu0 0.0
    %1340 = vmatpush1.msra.mxu0 0.0
    %1341 = vmatprep.subr.mxu0 0.0
    %1342 = vmatpush1.msra.mxu0 0.0
    %1343 = vmatprep.subr.mxu0 0.0
    %1344 = vmatpush1.msra.mxu0 0.0
    %1345 = vmatprep.subr.mxu0 0.0
    %1346 = vmatpush1.msra.mxu0 0.0
    %1347 = vmatprep.subr.mxu0 0.0
    %1348 = vmatpush1.msra.mxu0 0.0
    %1349 = vmatprep.subr.mxu0 0.0
    %1350 = vmatpush1.msra.mxu0 0.0
    %1351 = vmatprep.subr.mxu0 0.0
    %1352 = vmatpush1.msra.mxu0 0.0
    %1353 = vmatprep.subr.mxu0 0.0
    %1354 = vmatpush1.msra.mxu0 0.0
    %1355 = vmatprep.subr.mxu0 0.0
    %1356 = vmatpush1.msra.mxu0 0.0
    %1357 = vmatprep.subr.mxu0 0.0
    %1358 = vmatpush1.msra.mxu0 0.0
    %1359 = vmatprep.subr.mxu0 0.0
    %1360 = vmatpush1.msra.mxu0 0.0
    %1361 = vmatprep.subr.mxu0 0.0
    %1362 = vmatpush1.msra.mxu0 0.0
    %1363 = vmatprep.subr.mxu0 0.0
    %1364 = vmatpush1.msra.mxu0 0.0
    %1365 = vmatprep.subr.mxu0 0.0
    %1366 = vmatpush1.msra.mxu0 0.0
    %1367 = vmatprep.mubr.f32.mxu0 0.0
    %1368 = vmatmul.mubr.f32.gmra.mrb[0].mxu0 %v1301
    %v1369 = vpop.f32.mrb[0].mxu0
    %v1370 = vadd.f32 %v1298, %v1369
    %v1371 = vpop.f32.mrb[0].mxu0
    %1372 = vdwg.mxu0
    %vm1373 = vcmask 517120
    %1374 = vst.msk [vmem:[#allocation3] sm:$0x3] %vm1373, %v1370
    %vm1375 = vcmask 254976
    %1376 = vst.msk [vmem:[%s17] sm:$0x3] %vm1375, %v1288
    %v1377 = vsel %vm317, %v465, %v384
    %1379 = vst.msk [vmem:[#allocation5] sm:$0x3] %vm320, %v1377
    // Predicated region
    $region66: #{decoder_forward.1} parent=1 // pred_check
      _
    $region67: #{decoder_forward.1} parent=1 // pred_check_branch
      %1381 = sbr.rel (0) target = $region69
    $region68: #{decoder_forward.1} parent=1 // pred_region
      %s1383 = ssub.s32 32, 32
      %1384 = vsyncadd [#allocation4], %s1383
      %s1386 = sshll.u32 [#allocation3], 4
      %s1387 = int_to_ptr.vmem [resolvable:$true] %s1386
      %1389 = dma.vmem_to_hbm [thread:$0]  %s1387, 32, %s16, [#allocation4]
    $region69: #{decoder_forward.1} parent=1 // pred_fallthru
      _
    // Predicated region
    $region70: #{decoder_forward.1} parent=1 // pred_check
      _
    $region71: #{decoder_forward.1} parent=1 // pred_check_branch
      %1391 = sbr.rel (0) target = $region73
    $region72: #{decoder_forward.1} parent=1 // pred_region
      _
    $region73: #{decoder_forward.1} parent=1 // pred_fallthru
      _
    // Predicated region
    $region74: #{decoder_forward.1} parent=1 // pred_check
      _
    $region75: #{decoder_forward.1} parent=1 // pred_check_branch
      %1393 = sbr.rel (0) target = $region77
    $region76: #{decoder_forward.1} parent=1 // pred_region
      %s1395 = ssub.s32 32, 32
      %1396 = vsyncadd [#allocation6], %s1395
      %s1398 = sshll.u32 [#allocation5], 4
      %s1399 = int_to_ptr.vmem [resolvable:$true] %s1398
      %1401 = dma.vmem_to_hbm [thread:$0]  %s1399, 32, %s18, [#allocation6]
    $region77: #{decoder_forward.1} parent=1 // pred_fallthru
      _
    // Predicated region
    $region78: #{decoder_forward.1} parent=1 // pred_check
      _
    $region79: #{decoder_forward.1} parent=1 // pred_check_branch
      %1403 = sbr.rel (0) target = $region81
    $region80: #{decoder_forward.1} parent=1 // pred_region
      %1404 = dma.done [#allocation4], 32
    $region81: #{decoder_forward.1} parent=1 // pred_fallthru
      _
    // Predicated region
    $region82: #{decoder_forward.1} parent=1 // pred_check
      _
    $region83: #{decoder_forward.1} parent=1 // pred_check_branch
      %1406 = sbr.rel (0) target = $region85
    $region84: #{decoder_forward.1} parent=1 // pred_region
      _
    $region85: #{decoder_forward.1} parent=1 // pred_fallthru
      _
    // Predicated region
    $region86: #{decoder_forward.1} parent=1 // pred_check
      _
    $region87: #{decoder_forward.1} parent=1 // pred_check_branch
      %1408 = sbr.rel (0) target = $region89
    $region88: #{decoder_forward.1} parent=1 // pred_region
      %1409 = dma.done [#allocation6], 32
    $region89: #{decoder_forward.1} parent=1 // pred_fallthru
      _
    %1410 = vsyncpa [#allocation4], 1
    %1411 = vsyncpa [#allocation6], 1

</llo_original>
